<compile_context>
chip_gen: v5e
topology: v5e:2x2
jax: 0.10.0
libtpu: 0.0.40
codegen_flags: <defaults>
</compile_context>

<pallas_src>
import jax
import jax.numpy as jnp
from jax import lax
from jax.experimental import pallas as pl
from jax.experimental.pallas import tpu as pltpu


def lstm_fc_kernel(x_ref, wih_ref, whh_ref, b_ref,
                   w1_ref, b1_ref, w2_ref, b2_ref, out_ref):
    # x_ref:  (T*Bp, D)       time-major, batch-padded, flattened input
    # wih_ref:(D, 4*Hp)       input->gates weight, gate blocks padded to 128
    # whh_ref:(Hp, 4*Hp)      hidden->gates weight, rows+gate blocks padded
    # b_ref:  (1, 4*Hp)       b_ih + b_hh, gate blocks padded
    # w1_ref: (Hp, H2p), b1_ref: (1, H2p)
    # w2_ref: (H2p, Op), b2_ref: (1, Op)
    # out_ref:(Bp, Op)
    Bp = out_ref.shape[0]
    TB = x_ref.shape[0]
    T = TB // Bp
    Hp = whh_ref.shape[0]

    wih = wih_ref[...]
    whh = whh_ref[...]

    # Hoisted input projection + folded bias: one MXU matmul for the whole
    # sequence, off the serial critical path.
    xw = jnp.dot(x_ref[...], wih, preferred_element_type=jnp.float32) + b_ref[...]

    h = jnp.zeros((Bp, Hp), jnp.float32)
    c = jnp.zeros((Bp, Hp), jnp.float32)

    # Static unroll: T is small and fixed; gives the scheduler cross-iteration
    # visibility and removes per-step scalar loop overhead.
    for t in range(T):
        gates = xw[t * Bp:(t + 1) * Bp, :] + jnp.dot(
            h, whh, preferred_element_type=jnp.float32)          # (Bp, 4*Hp)
        # Lane-aligned whole-vreg gate slices (Hp = 128).
        i_g = jax.nn.sigmoid(gates[:, 0 * Hp:1 * Hp])
        f_g = jax.nn.sigmoid(gates[:, 1 * Hp:2 * Hp])
        g_g = jnp.tanh(gates[:, 2 * Hp:3 * Hp])
        o_g = jax.nn.sigmoid(gates[:, 3 * Hp:4 * Hp])
        c = f_g * c + i_g * g_g
        h = o_g * jnp.tanh(c)

    # fc head: Linear -> ReLU -> Linear (all lane-padded, zero-inert).
    hid = jnp.maximum(
        jnp.dot(h, w1_ref[...], preferred_element_type=jnp.float32)
        + b1_ref[...], 0.0)
    out_ref[...] = (jnp.dot(hid, w2_ref[...], preferred_element_type=jnp.float32)
                    + b2_ref[...])


def lstm_forward(x, params):
    """x: (B, T, D) float32 -> (B, output_dim) float32."""
    B, T, D = x.shape
    wih, whh, bih, bhh, w1, b1, w2, b2 = params
    H = whh.shape[1]
    H2 = w1.shape[0]
    O = w2.shape[0]

    LANE, SUB = 128, 8
    Hp = ((H + LANE - 1) // LANE) * LANE
    H2p = ((H2 + LANE - 1) // LANE) * LANE
    Op = ((O + LANE - 1) // LANE) * LANE
    Bp = ((B + SUB - 1) // SUB) * SUB

    f32 = jnp.float32

    # x: (B, T, D) -> time-major, batch-padded, flattened to (T*Bp, D).
    x_tm = jnp.transpose(x, (1, 0, 2)).astype(f32)                  # (T, B, D)
    x_tm = jnp.pad(x_tm, ((0, 0), (0, Bp - B), (0, 0)))             # (T, Bp, D)
    x_flat = x_tm.reshape(T * Bp, D)

    # Pad each gate's column block to a full 128-lane block (gate order i,f,g,o).
    wih_p = jnp.pad(jnp.transpose(wih).astype(f32).reshape(D, 4, H),
                    ((0, 0), (0, 0), (0, Hp - H))).reshape(D, 4 * Hp)
    whh_p = jnp.pad(jnp.transpose(whh).astype(f32).reshape(H, 4, H),
                    ((0, Hp - H), (0, 0), (0, Hp - H))).reshape(Hp, 4 * Hp)
    b_p = jnp.pad((bih + bhh).astype(f32).reshape(4, H),
                  ((0, 0), (0, Hp - H))).reshape(1, 4 * Hp)

    # fc head, lane-padded; zero padding keeps padded lanes at exactly 0.
    w1_p = jnp.pad(jnp.transpose(w1).astype(f32),
                   ((0, Hp - H), (0, H2p - H2)))                    # (Hp, H2p)
    b1_p = jnp.pad(b1.astype(f32).reshape(1, H2), ((0, 0), (0, H2p - H2)))
    w2_p = jnp.pad(jnp.transpose(w2).astype(f32),
                   ((0, H2p - H2), (0, Op - O)))                    # (H2p, Op)
    b2_p = jnp.pad(b2.astype(f32).reshape(1, O), ((0, 0), (0, Op - O)))

    vmem = pl.BlockSpec(memory_space=pltpu.MemorySpace.VMEM)
    out_p = pl.pallas_call(
        lstm_fc_kernel,
        out_shape=jax.ShapeDtypeStruct((Bp, Op), f32),
        in_specs=[vmem] * 8,
        out_specs=vmem,
    )(x_flat, wih_p, whh_p, b_p, w1_p, b1_p, w2_p, b2_p)
    return out_p[:B, :O]


def lstm_forward_ref(x, params):
    """Pure-JAX reference matching PyTorch nn.LSTM + fc head."""
    wih, whh, bih, bhh, w1, b1, w2, b2 = params
    H = whh.shape[1]
    B = x.shape[0]

    def step(carry, x_t):
        h, c = carry
        gates = x_t @ wih.T + bih + h @ whh.T + bhh
        i_g = jax.nn.sigmoid(gates[:, 0 * H:1 * H])
        f_g = jax.nn.sigmoid(gates[:, 1 * H:2 * H])
        g_g = jnp.tanh(gates[:, 2 * H:3 * H])
        o_g = jax.nn.sigmoid(gates[:, 3 * H:4 * H])
        c_new = f_g * c + i_g * g_g
        h_new = o_g * jnp.tanh(c_new)
        return (h_new, c_new), None

    h0 = jnp.zeros((B, H), jnp.float32)
    c0 = jnp.zeros((B, H), jnp.float32)
    (h_last, _), _ = lax.scan(step, (h0, c0), jnp.transpose(x, (1, 0, 2)))
    hid = jnp.maximum(h_last @ w1.T + b1, 0.0)
    return hid @ w2.T + b2


def init_params(key, input_dim, hidden_dim, output_dim):
    """Deterministic init (PyTorch-style uniform +-1/sqrt(hidden))."""
    ks = jax.random.split(key, 8)
    s = 1.0 / jnp.sqrt(hidden_dim)
    H2 = hidden_dim // 2
    wih = jax.random.uniform(ks[0], (4 * hidden_dim, input_dim), jnp.float32, -s, s)
    whh = jax.random.uniform(ks[1], (4 * hidden_dim, hidden_dim), jnp.float32, -s, s)
    bih = jax.random.uniform(ks[2], (4 * hidden_dim,), jnp.float32, -s, s)
    bhh = jax.random.uniform(ks[3], (4 * hidden_dim,), jnp.float32, -s, s)
    s1 = 1.0 / jnp.sqrt(hidden_dim)
    w1 = jax.random.uniform(ks[4], (H2, hidden_dim), jnp.float32, -s1, s1)
    b1 = jax.random.uniform(ks[5], (H2,), jnp.float32, -s1, s1)
    s2 = 1.0 / jnp.sqrt(H2)
    w2 = jax.random.uniform(ks[6], (output_dim, H2), jnp.float32, -s2, s2)
    b2 = jax.random.uniform(ks[7], (output_dim,), jnp.float32, -s2, s2)
    return (wih, whh, bih, bhh, w1, b1, w2, b2)


if __name__ == "__main__":
    # Small shapes consistent with the module: input_dim=9, hidden_dim=56,
    # output_dim=1, single LSTM layer (layers=1).
    batch, seq_len, input_dim = 4, 8, 9
    hidden_dim, output_dim = 56, 1

    key = jax.random.PRNGKey(0)
    k_x, k_p = jax.random.split(key)
    x = jax.random.normal(k_x, (batch, seq_len, input_dim), dtype=jnp.float32)
    params = init_params(k_p, input_dim, hidden_dim, output_dim)

    out = jax.block_until_ready(lstm_forward(x, params))
    ref = jax.block_until_ready(lstm_forward_ref(x, params))

    assert out.shape == (batch, output_dim)
    assert jnp.allclose(out, ref, atol=1e-4, rtol=1e-4), (out, ref)
    print("KERNEL_OK")
</pallas_src>

<mosaic_0001>
module attributes {stable_mosaic.version = 11 : i64} {
  func.func @lstm_fc_kernel(%arg0: memref<64x9xf32, #tpu.memory_space<vmem>>, %arg1: memref<9x512xf32, #tpu.memory_space<vmem>>, %arg2: memref<128x512xf32, #tpu.memory_space<vmem>>, %arg3: memref<1x512xf32, #tpu.memory_space<vmem>>, %arg4: memref<128x128xf32, #tpu.memory_space<vmem>>, %arg5: memref<1x128xf32, #tpu.memory_space<vmem>>, %arg6: memref<128x128xf32, #tpu.memory_space<vmem>>, %arg7: memref<1x128xf32, #tpu.memory_space<vmem>>, %arg8: memref<8x128xf32, #tpu.memory_space<vmem>>) attributes {dimension_semantics = [], scalar_prefetch = 0 : i64, scratch_operands = 0 : i64, tpu.core_type = #tpu.core_type<tc>} {
    %c0 = arith.constant 0 : index
    %c0_0 = arith.constant 0 : index
    %0 = vector.load %arg1[%c0, %c0_0] : memref<9x512xf32, #tpu.memory_space<vmem>>, vector<9x512xf32>
    %c0_1 = arith.constant 0 : index
    %c0_2 = arith.constant 0 : index
    %1 = vector.load %arg2[%c0_1, %c0_2] : memref<128x512xf32, #tpu.memory_space<vmem>>, vector<128x512xf32>
    %c0_3 = arith.constant 0 : index
    %c0_4 = arith.constant 0 : index
    %2 = vector.load %arg0[%c0_3, %c0_4] : memref<64x9xf32, #tpu.memory_space<vmem>>, vector<64x9xf32>
    %cst = arith.constant dense<0.000000e+00> : vector<64x512xf32>
    %3 = tpu.matmul %2, %0, %cst {dimension_numbers = #tpu.dot_dimension_numbers<[1], [0], [0], [1], [0, 0, 1, 1], [], []>} : vector<64x9xf32>, vector<9x512xf32>, vector<64x512xf32> -> vector<64x512xf32>
    %c0_5 = arith.constant 0 : index
    %c0_6 = arith.constant 0 : index
    %4 = vector.load %arg3[%c0_5, %c0_6] : memref<1x512xf32, #tpu.memory_space<vmem>>, vector<1x512xf32>
    %5 = vector.broadcast %4 : vector<1x512xf32> to vector<64x512xf32>
    %6 = arith.addf %3, %5 : vector<64x512xf32>
    %cst_7 = arith.constant 0.000000e+00 : f32
    %7 = vector.broadcast %cst_7 : f32 to vector<8x128xf32>
    %cst_8 = arith.constant 0.000000e+00 : f32
    %8 = vector.broadcast %cst_8 : f32 to vector<8x128xf32>
    %9 = vector.extract_strided_slice %6 {offsets = [0, 0], sizes = [8, 512], strides = [1, 1]} : vector<64x512xf32> to vector<8x512xf32>
    %cst_9 = arith.constant dense<0.000000e+00> : vector<8x512xf32>
    %10 = tpu.matmul %7, %1, %cst_9 {dimension_numbers = #tpu.dot_dimension_numbers<[1], [0], [0], [1], [0, 0, 1, 1], [], []>} : vector<8x128xf32>, vector<128x512xf32>, vector<8x512xf32> -> vector<8x512xf32>
    %11 = arith.addf %9, %10 : vector<8x512xf32>
    %12 = vector.extract_strided_slice %11 {offsets = [0, 0], sizes = [8, 128], strides = [1, 1]} : vector<8x512xf32> to vector<8x128xf32>
    %13 = arith.negf %12 : vector<8x128xf32>
    %14 = math.exp %13 : vector<8x128xf32>
    %cst_10 = arith.constant 1.000000e+00 : f32
    %15 = vector.broadcast %cst_10 : f32 to vector<8x128xf32>
    %16 = arith.addf %15, %14 : vector<8x128xf32>
    %17 = arith.divf %15, %16 : vector<8x128xf32>
    %18 = vector.extract_strided_slice %11 {offsets = [0, 128], sizes = [8, 128], strides = [1, 1]} : vector<8x512xf32> to vector<8x128xf32>
    %19 = arith.negf %18 : vector<8x128xf32>
    %20 = math.exp %19 : vector<8x128xf32>
    %cst_11 = arith.constant 1.000000e+00 : f32
    %21 = vector.broadcast %cst_11 : f32 to vector<8x128xf32>
    %22 = arith.addf %21, %20 : vector<8x128xf32>
    %23 = arith.divf %21, %22 : vector<8x128xf32>
    %24 = vector.extract_strided_slice %11 {offsets = [0, 256], sizes = [8, 128], strides = [1, 1]} : vector<8x512xf32> to vector<8x128xf32>
    %25 = math.tanh %24 : vector<8x128xf32>
    %26 = vector.extract_strided_slice %11 {offsets = [0, 384], sizes = [8, 128], strides = [1, 1]} : vector<8x512xf32> to vector<8x128xf32>
    %27 = arith.negf %26 : vector<8x128xf32>
    %28 = math.exp %27 : vector<8x128xf32>
    %cst_12 = arith.constant 1.000000e+00 : f32
    %29 = vector.broadcast %cst_12 : f32 to vector<8x128xf32>
    %30 = arith.addf %29, %28 : vector<8x128xf32>
    %31 = arith.divf %29, %30 : vector<8x128xf32>
    %32 = arith.mulf %23, %8 : vector<8x128xf32>
    %33 = arith.mulf %17, %25 : vector<8x128xf32>
    %34 = arith.addf %32, %33 : vector<8x128xf32>
    %35 = math.tanh %34 : vector<8x128xf32>
    %36 = arith.mulf %31, %35 : vector<8x128xf32>
    %37 = vector.extract_strided_slice %6 {offsets = [8, 0], sizes = [8, 512], strides = [1, 1]} : vector<64x512xf32> to vector<8x512xf32>
    %cst_13 = arith.constant dense<0.000000e+00> : vector<8x512xf32>
    %38 = tpu.matmul %36, %1, %cst_13 {dimension_numbers = #tpu.dot_dimension_numbers<[1], [0], [0], [1], [0, 0, 1, 1], [], []>} : vector<8x128xf32>, vector<128x512xf32>, vector<8x512xf32> -> vector<8x512xf32>
    %39 = arith.addf %37, %38 : vector<8x512xf32>
    %40 = vector.extract_strided_slice %39 {offsets = [0, 0], sizes = [8, 128], strides = [1, 1]} : vector<8x512xf32> to vector<8x128xf32>
    %41 = arith.negf %40 : vector<8x128xf32>
    %42 = math.exp %41 : vector<8x128xf32>
    %cst_14 = arith.constant 1.000000e+00 : f32
    %43 = vector.broadcast %cst_14 : f32 to vector<8x128xf32>
    %44 = arith.addf %43, %42 : vector<8x128xf32>
    %45 = arith.divf %43, %44 : vector<8x128xf32>
    %46 = vector.extract_strided_slice %39 {offsets = [0, 128], sizes = [8, 128], strides = [1, 1]} : vector<8x512xf32> to vector<8x128xf32>
    %47 = arith.negf %46 : vector<8x128xf32>
    %48 = math.exp %47 : vector<8x128xf32>
    %cst_15 = arith.constant 1.000000e+00 : f32
    %49 = vector.broadcast %cst_15 : f32 to vector<8x128xf32>
    %50 = arith.addf %49, %48 : vector<8x128xf32>
    %51 = arith.divf %49, %50 : vector<8x128xf32>
    %52 = vector.extract_strided_slice %39 {offsets = [0, 256], sizes = [8, 128], strides = [1, 1]} : vector<8x512xf32> to vector<8x128xf32>
    %53 = math.tanh %52 : vector<8x128xf32>
    %54 = vector.extract_strided_slice %39 {offsets = [0, 384], sizes = [8, 128], strides = [1, 1]} : vector<8x512xf32> to vector<8x128xf32>
    %55 = arith.negf %54 : vector<8x128xf32>
    %56 = math.exp %55 : vector<8x128xf32>
    %cst_16 = arith.constant 1.000000e+00 : f32
    %57 = vector.broadcast %cst_16 : f32 to vector<8x128xf32>
    %58 = arith.addf %57, %56 : vector<8x128xf32>
    %59 = arith.divf %57, %58 : vector<8x128xf32>
    %60 = arith.mulf %51, %34 : vector<8x128xf32>
    %61 = arith.mulf %45, %53 : vector<8x128xf32>
    %62 = arith.addf %60, %61 : vector<8x128xf32>
    %63 = math.tanh %62 : vector<8x128xf32>
    %64 = arith.mulf %59, %63 : vector<8x128xf32>
    %65 = vector.extract_strided_slice %6 {offsets = [16, 0], sizes = [8, 512], strides = [1, 1]} : vector<64x512xf32> to vector<8x512xf32>
    %cst_17 = arith.constant dense<0.000000e+00> : vector<8x512xf32>
    %66 = tpu.matmul %64, %1, %cst_17 {dimension_numbers = #tpu.dot_dimension_numbers<[1], [0], [0], [1], [0, 0, 1, 1], [], []>} : vector<8x128xf32>, vector<128x512xf32>, vector<8x512xf32> -> vector<8x512xf32>
    %67 = arith.addf %65, %66 : vector<8x512xf32>
    %68 = vector.extract_strided_slice %67 {offsets = [0, 0], sizes = [8, 128], strides = [1, 1]} : vector<8x512xf32> to vector<8x128xf32>
    %69 = arith.negf %68 : vector<8x128xf32>
    %70 = math.exp %69 : vector<8x128xf32>
    %cst_18 = arith.constant 1.000000e+00 : f32
    %71 = vector.broadcast %cst_18 : f32 to vector<8x128xf32>
    %72 = arith.addf %71, %70 : vector<8x128xf32>
    %73 = arith.divf %71, %72 : vector<8x128xf32>
    %74 = vector.extract_strided_slice %67 {offsets = [0, 128], sizes = [8, 128], strides = [1, 1]} : vector<8x512xf32> to vector<8x128xf32>
    %75 = arith.negf %74 : vector<8x128xf32>
    %76 = math.exp %75 : vector<8x128xf32>
    %cst_19 = arith.constant 1.000000e+00 : f32
    %77 = vector.broadcast %cst_19 : f32 to vector<8x128xf32>
    %78 = arith.addf %77, %76 : vector<8x128xf32>
    %79 = arith.divf %77, %78 : vector<8x128xf32>
    %80 = vector.extract_strided_slice %67 {offsets = [0, 256], sizes = [8, 128], strides = [1, 1]} : vector<8x512xf32> to vector<8x128xf32>
    %81 = math.tanh %80 : vector<8x128xf32>
    %82 = vector.extract_strided_slice %67 {offsets = [0, 384], sizes = [8, 128], strides = [1, 1]} : vector<8x512xf32> to vector<8x128xf32>
    %83 = arith.negf %82 : vector<8x128xf32>
    %84 = math.exp %83 : vector<8x128xf32>
    %cst_20 = arith.constant 1.000000e+00 : f32
    %85 = vector.broadcast %cst_20 : f32 to vector<8x128xf32>
    %86 = arith.addf %85, %84 : vector<8x128xf32>
    %87 = arith.divf %85, %86 : vector<8x128xf32>
    %88 = arith.mulf %79, %62 : vector<8x128xf32>
    %89 = arith.mulf %73, %81 : vector<8x128xf32>
    %90 = arith.addf %88, %89 : vector<8x128xf32>
    %91 = math.tanh %90 : vector<8x128xf32>
    %92 = arith.mulf %87, %91 : vector<8x128xf32>
    %93 = vector.extract_strided_slice %6 {offsets = [24, 0], sizes = [8, 512], strides = [1, 1]} : vector<64x512xf32> to vector<8x512xf32>
    %cst_21 = arith.constant dense<0.000000e+00> : vector<8x512xf32>
    %94 = tpu.matmul %92, %1, %cst_21 {dimension_numbers = #tpu.dot_dimension_numbers<[1], [0], [0], [1], [0, 0, 1, 1], [], []>} : vector<8x128xf32>, vector<128x512xf32>, vector<8x512xf32> -> vector<8x512xf32>
    %95 = arith.addf %93, %94 : vector<8x512xf32>
    %96 = vector.extract_strided_slice %95 {offsets = [0, 0], sizes = [8, 128], strides = [1, 1]} : vector<8x512xf32> to vector<8x128xf32>
    %97 = arith.negf %96 : vector<8x128xf32>
    %98 = math.exp %97 : vector<8x128xf32>
    %cst_22 = arith.constant 1.000000e+00 : f32
    %99 = vector.broadcast %cst_22 : f32 to vector<8x128xf32>
    %100 = arith.addf %99, %98 : vector<8x128xf32>
    %101 = arith.divf %99, %100 : vector<8x128xf32>
    %102 = vector.extract_strided_slice %95 {offsets = [0, 128], sizes = [8, 128], strides = [1, 1]} : vector<8x512xf32> to vector<8x128xf32>
    %103 = arith.negf %102 : vector<8x128xf32>
    %104 = math.exp %103 : vector<8x128xf32>
    %cst_23 = arith.constant 1.000000e+00 : f32
    %105 = vector.broadcast %cst_23 : f32 to vector<8x128xf32>
    %106 = arith.addf %105, %104 : vector<8x128xf32>
    %107 = arith.divf %105, %106 : vector<8x128xf32>
    %108 = vector.extract_strided_slice %95 {offsets = [0, 256], sizes = [8, 128], strides = [1, 1]} : vector<8x512xf32> to vector<8x128xf32>
    %109 = math.tanh %108 : vector<8x128xf32>
    %110 = vector.extract_strided_slice %95 {offsets = [0, 384], sizes = [8, 128], strides = [1, 1]} : vector<8x512xf32> to vector<8x128xf32>
    %111 = arith.negf %110 : vector<8x128xf32>
    %112 = math.exp %111 : vector<8x128xf32>
    %cst_24 = arith.constant 1.000000e+00 : f32
    %113 = vector.broadcast %cst_24 : f32 to vector<8x128xf32>
    %114 = arith.addf %113, %112 : vector<8x128xf32>
    %115 = arith.divf %113, %114 : vector<8x128xf32>
    %116 = arith.mulf %107, %90 : vector<8x128xf32>
    %117 = arith.mulf %101, %109 : vector<8x128xf32>
    %118 = arith.addf %116, %117 : vector<8x128xf32>
    %119 = math.tanh %118 : vector<8x128xf32>
    %120 = arith.mulf %115, %119 : vector<8x128xf32>
    %121 = vector.extract_strided_slice %6 {offsets = [32, 0], sizes = [8, 512], strides = [1, 1]} : vector<64x512xf32> to vector<8x512xf32>
    %cst_25 = arith.constant dense<0.000000e+00> : vector<8x512xf32>
    %122 = tpu.matmul %120, %1, %cst_25 {dimension_numbers = #tpu.dot_dimension_numbers<[1], [0], [0], [1], [0, 0, 1, 1], [], []>} : vector<8x128xf32>, vector<128x512xf32>, vector<8x512xf32> -> vector<8x512xf32>
    %123 = arith.addf %121, %122 : vector<8x512xf32>
    %124 = vector.extract_strided_slice %123 {offsets = [0, 0], sizes = [8, 128], strides = [1, 1]} : vector<8x512xf32> to vector<8x128xf32>
    %125 = arith.negf %124 : vector<8x128xf32>
    %126 = math.exp %125 : vector<8x128xf32>
    %cst_26 = arith.constant 1.000000e+00 : f32
    %127 = vector.broadcast %cst_26 : f32 to vector<8x128xf32>
    %128 = arith.addf %127, %126 : vector<8x128xf32>
    %129 = arith.divf %127, %128 : vector<8x128xf32>
    %130 = vector.extract_strided_slice %123 {offsets = [0, 128], sizes = [8, 128], strides = [1, 1]} : vector<8x512xf32> to vector<8x128xf32>
    %131 = arith.negf %130 : vector<8x128xf32>
    %132 = math.exp %131 : vector<8x128xf32>
    %cst_27 = arith.constant 1.000000e+00 : f32
    %133 = vector.broadcast %cst_27 : f32 to vector<8x128xf32>
    %134 = arith.addf %133, %132 : vector<8x128xf32>
    %135 = arith.divf %133, %134 : vector<8x128xf32>
    %136 = vector.extract_strided_slice %123 {offsets = [0, 256], sizes = [8, 128], strides = [1, 1]} : vector<8x512xf32> to vector<8x128xf32>
    %137 = math.tanh %136 : vector<8x128xf32>
    %138 = vector.extract_strided_slice %123 {offsets = [0, 384], sizes = [8, 128], strides = [1, 1]} : vector<8x512xf32> to vector<8x128xf32>
    %139 = arith.negf %138 : vector<8x128xf32>
    %140 = math.exp %139 : vector<8x128xf32>
    %cst_28 = arith.constant 1.000000e+00 : f32
    %141 = vector.broadcast %cst_28 : f32 to vector<8x128xf32>
    %142 = arith.addf %141, %140 : vector<8x128xf32>
    %143 = arith.divf %141, %142 : vector<8x128xf32>
    %144 = arith.mulf %135, %118 : vector<8x128xf32>
    %145 = arith.mulf %129, %137 : vector<8x128xf32>
    %146 = arith.addf %144, %145 : vector<8x128xf32>
    %147 = math.tanh %146 : vector<8x128xf32>
    %148 = arith.mulf %143, %147 : vector<8x128xf32>
    %149 = vector.extract_strided_slice %6 {offsets = [40, 0], sizes = [8, 512], strides = [1, 1]} : vector<64x512xf32> to vector<8x512xf32>
    %cst_29 = arith.constant dense<0.000000e+00> : vector<8x512xf32>
    %150 = tpu.matmul %148, %1, %cst_29 {dimension_numbers = #tpu.dot_dimension_numbers<[1], [0], [0], [1], [0, 0, 1, 1], [], []>} : vector<8x128xf32>, vector<128x512xf32>, vector<8x512xf32> -> vector<8x512xf32>
    %151 = arith.addf %149, %150 : vector<8x512xf32>
    %152 = vector.extract_strided_slice %151 {offsets = [0, 0], sizes = [8, 128], strides = [1, 1]} : vector<8x512xf32> to vector<8x128xf32>
    %153 = arith.negf %152 : vector<8x128xf32>
    %154 = math.exp %153 : vector<8x128xf32>
    %cst_30 = arith.constant 1.000000e+00 : f32
    %155 = vector.broadcast %cst_30 : f32 to vector<8x128xf32>
    %156 = arith.addf %155, %154 : vector<8x128xf32>
    %157 = arith.divf %155, %156 : vector<8x128xf32>
    %158 = vector.extract_strided_slice %151 {offsets = [0, 128], sizes = [8, 128], strides = [1, 1]} : vector<8x512xf32> to vector<8x128xf32>
    %159 = arith.negf %158 : vector<8x128xf32>
    %160 = math.exp %159 : vector<8x128xf32>
    %cst_31 = arith.constant 1.000000e+00 : f32
    %161 = vector.broadcast %cst_31 : f32 to vector<8x128xf32>
    %162 = arith.addf %161, %160 : vector<8x128xf32>
    %163 = arith.divf %161, %162 : vector<8x128xf32>
    %164 = vector.extract_strided_slice %151 {offsets = [0, 256], sizes = [8, 128], strides = [1, 1]} : vector<8x512xf32> to vector<8x128xf32>
    %165 = math.tanh %164 : vector<8x128xf32>
    %166 = vector.extract_strided_slice %151 {offsets = [0, 384], sizes = [8, 128], strides = [1, 1]} : vector<8x512xf32> to vector<8x128xf32>
    %167 = arith.negf %166 : vector<8x128xf32>
    %168 = math.exp %167 : vector<8x128xf32>
    %cst_32 = arith.constant 1.000000e+00 : f32
    %169 = vector.broadcast %cst_32 : f32 to vector<8x128xf32>
    %170 = arith.addf %169, %168 : vector<8x128xf32>
    %171 = arith.divf %169, %170 : vector<8x128xf32>
    %172 = arith.mulf %163, %146 : vector<8x128xf32>
    %173 = arith.mulf %157, %165 : vector<8x128xf32>
    %174 = arith.addf %172, %173 : vector<8x128xf32>
    %175 = math.tanh %174 : vector<8x128xf32>
    %176 = arith.mulf %171, %175 : vector<8x128xf32>
    %177 = vector.extract_strided_slice %6 {offsets = [48, 0], sizes = [8, 512], strides = [1, 1]} : vector<64x512xf32> to vector<8x512xf32>
    %cst_33 = arith.constant dense<0.000000e+00> : vector<8x512xf32>
    %178 = tpu.matmul %176, %1, %cst_33 {dimension_numbers = #tpu.dot_dimension_numbers<[1], [0], [0], [1], [0, 0, 1, 1], [], []>} : vector<8x128xf32>, vector<128x512xf32>, vector<8x512xf32> -> vector<8x512xf32>
    %179 = arith.addf %177, %178 : vector<8x512xf32>
    %180 = vector.extract_strided_slice %179 {offsets = [0, 0], sizes = [8, 128], strides = [1, 1]} : vector<8x512xf32> to vector<8x128xf32>
    %181 = arith.negf %180 : vector<8x128xf32>
    %182 = math.exp %181 : vector<8x128xf32>
    %cst_34 = arith.constant 1.000000e+00 : f32
    %183 = vector.broadcast %cst_34 : f32 to vector<8x128xf32>
    %184 = arith.addf %183, %182 : vector<8x128xf32>
    %185 = arith.divf %183, %184 : vector<8x128xf32>
    %186 = vector.extract_strided_slice %179 {offsets = [0, 128], sizes = [8, 128], strides = [1, 1]} : vector<8x512xf32> to vector<8x128xf32>
    %187 = arith.negf %186 : vector<8x128xf32>
    %188 = math.exp %187 : vector<8x128xf32>
    %cst_35 = arith.constant 1.000000e+00 : f32
    %189 = vector.broadcast %cst_35 : f32 to vector<8x128xf32>
    %190 = arith.addf %189, %188 : vector<8x128xf32>
    %191 = arith.divf %189, %190 : vector<8x128xf32>
    %192 = vector.extract_strided_slice %179 {offsets = [0, 256], sizes = [8, 128], strides = [1, 1]} : vector<8x512xf32> to vector<8x128xf32>
    %193 = math.tanh %192 : vector<8x128xf32>
    %194 = vector.extract_strided_slice %179 {offsets = [0, 384], sizes = [8, 128], strides = [1, 1]} : vector<8x512xf32> to vector<8x128xf32>
    %195 = arith.negf %194 : vector<8x128xf32>
    %196 = math.exp %195 : vector<8x128xf32>
    %cst_36 = arith.constant 1.000000e+00 : f32
    %197 = vector.broadcast %cst_36 : f32 to vector<8x128xf32>
    %198 = arith.addf %197, %196 : vector<8x128xf32>
    %199 = arith.divf %197, %198 : vector<8x128xf32>
    %200 = arith.mulf %191, %174 : vector<8x128xf32>
    %201 = arith.mulf %185, %193 : vector<8x128xf32>
    %202 = arith.addf %200, %201 : vector<8x128xf32>
    %203 = math.tanh %202 : vector<8x128xf32>
    %204 = arith.mulf %199, %203 : vector<8x128xf32>
    %205 = vector.extract_strided_slice %6 {offsets = [56, 0], sizes = [8, 512], strides = [1, 1]} : vector<64x512xf32> to vector<8x512xf32>
    %cst_37 = arith.constant dense<0.000000e+00> : vector<8x512xf32>
    %206 = tpu.matmul %204, %1, %cst_37 {dimension_numbers = #tpu.dot_dimension_numbers<[1], [0], [0], [1], [0, 0, 1, 1], [], []>} : vector<8x128xf32>, vector<128x512xf32>, vector<8x512xf32> -> vector<8x512xf32>
    %207 = arith.addf %205, %206 : vector<8x512xf32>
    %208 = vector.extract_strided_slice %207 {offsets = [0, 0], sizes = [8, 128], strides = [1, 1]} : vector<8x512xf32> to vector<8x128xf32>
    %209 = arith.negf %208 : vector<8x128xf32>
    %210 = math.exp %209 : vector<8x128xf32>
    %cst_38 = arith.constant 1.000000e+00 : f32
    %211 = vector.broadcast %cst_38 : f32 to vector<8x128xf32>
    %212 = arith.addf %211, %210 : vector<8x128xf32>
    %213 = arith.divf %211, %212 : vector<8x128xf32>
    %214 = vector.extract_strided_slice %207 {offsets = [0, 128], sizes = [8, 128], strides = [1, 1]} : vector<8x512xf32> to vector<8x128xf32>
    %215 = arith.negf %214 : vector<8x128xf32>
    %216 = math.exp %215 : vector<8x128xf32>
    %cst_39 = arith.constant 1.000000e+00 : f32
    %217 = vector.broadcast %cst_39 : f32 to vector<8x128xf32>
    %218 = arith.addf %217, %216 : vector<8x128xf32>
    %219 = arith.divf %217, %218 : vector<8x128xf32>
    %220 = vector.extract_strided_slice %207 {offsets = [0, 256], sizes = [8, 128], strides = [1, 1]} : vector<8x512xf32> to vector<8x128xf32>
    %221 = math.tanh %220 : vector<8x128xf32>
    %222 = vector.extract_strided_slice %207 {offsets = [0, 384], sizes = [8, 128], strides = [1, 1]} : vector<8x512xf32> to vector<8x128xf32>
    %223 = arith.negf %222 : vector<8x128xf32>
    %224 = math.exp %223 : vector<8x128xf32>
    %cst_40 = arith.constant 1.000000e+00 : f32
    %225 = vector.broadcast %cst_40 : f32 to vector<8x128xf32>
    %226 = arith.addf %225, %224 : vector<8x128xf32>
    %227 = arith.divf %225, %226 : vector<8x128xf32>
    %228 = arith.mulf %219, %202 : vector<8x128xf32>
    %229 = arith.mulf %213, %221 : vector<8x128xf32>
    %230 = arith.addf %228, %229 : vector<8x128xf32>
    %231 = math.tanh %230 : vector<8x128xf32>
    %232 = arith.mulf %227, %231 : vector<8x128xf32>
    %c0_41 = arith.constant 0 : index
    %c0_42 = arith.constant 0 : index
    %233 = vector.load %arg4[%c0_41, %c0_42] : memref<128x128xf32, #tpu.memory_space<vmem>>, vector<128x128xf32>
    %cst_43 = arith.constant dense<0.000000e+00> : vector<8x128xf32>
    %234 = tpu.matmul %232, %233, %cst_43 {dimension_numbers = #tpu.dot_dimension_numbers<[1], [0], [0], [1], [0, 0, 1, 1], [], []>} : vector<8x128xf32>, vector<128x128xf32>, vector<8x128xf32> -> vector<8x128xf32>
    %c0_44 = arith.constant 0 : index
    %c0_45 = arith.constant 0 : index
    %235 = vector.load %arg5[%c0_44, %c0_45] : memref<1x128xf32, #tpu.memory_space<vmem>>, vector<1x128xf32>
    %236 = vector.broadcast %235 : vector<1x128xf32> to vector<8x128xf32>
    %237 = arith.addf %234, %236 : vector<8x128xf32>
    %cst_46 = arith.constant 0.000000e+00 : f32
    %238 = vector.broadcast %cst_46 : f32 to vector<8x128xf32>
    %239 = arith.maximumf %237, %238 : vector<8x128xf32>
    %c0_47 = arith.constant 0 : index
    %c0_48 = arith.constant 0 : index
    %240 = vector.load %arg6[%c0_47, %c0_48] : memref<128x128xf32, #tpu.memory_space<vmem>>, vector<128x128xf32>
    %cst_49 = arith.constant dense<0.000000e+00> : vector<8x128xf32>
    %241 = tpu.matmul %239, %240, %cst_49 {dimension_numbers = #tpu.dot_dimension_numbers<[1], [0], [0], [1], [0, 0, 1, 1], [], []>} : vector<8x128xf32>, vector<128x128xf32>, vector<8x128xf32> -> vector<8x128xf32>
    %c0_50 = arith.constant 0 : index
    %c0_51 = arith.constant 0 : index
    %242 = vector.load %arg7[%c0_50, %c0_51] : memref<1x128xf32, #tpu.memory_space<vmem>>, vector<1x128xf32>
    %243 = vector.broadcast %242 : vector<1x128xf32> to vector<8x128xf32>
    %244 = arith.addf %241, %243 : vector<8x128xf32>
    %c0_52 = arith.constant 0 : index
    %c0_53 = arith.constant 0 : index
    %245 = vector.load %arg8[%c0_52, %c0_53] : memref<8x128xf32, #tpu.memory_space<vmem>>, vector<8x128xf32>
    tpu.vector_store %arg8[%c0_52, %c0_53], %244 {strides = array<i32>} : memref<8x128xf32, #tpu.memory_space<vmem>>, vector<8x128xf32>,
    return
  }
}

</mosaic_0001>

<llo_original>
// kernel: tpu_custom_call.1
$region0: #{tpu_custom_call.1}
  #allocation0 [shape = 'u32[]', space=smem, size = 0x4, offset = 0x4, fixed_abs, tag = 'smem constant byte address 0x4 - core index']
  #allocation1 [shape = 'u32[72,128]{1,0:T(1,128)}', space=vmem, size = 0x9000, scoped, tag = 'internal scratch']
  %s0 = inlined_call_operand.vmem [shape: f32[64,9], index: 0, kind: input, shape index: {}]
  %s1 = inlined_call_operand.vmem [shape: f32[9,512], index: 1, kind: input, shape index: {}]
  %s2 = inlined_call_operand.hbm [shape: f32[128,512], index: 2, kind: input, shape index: {}]
  %s3 = inlined_call_operand.vmem [shape: f32[1,512], index: 3, kind: input, shape index: {}]
  %s4 = inlined_call_operand.hbm [shape: f32[128,128], index: 4, kind: input, shape index: {}]
  %s5 = inlined_call_operand.vmem [shape: f32[1,128], index: 5, kind: input, shape index: {}]
  %s6 = inlined_call_operand.hbm [shape: f32[128,128], index: 6, kind: input, shape index: {}]
  %s7 = inlined_call_operand.vmem [shape: f32[1,128], index: 7, kind: input, shape index: {}]
  %s8 = inlined_call_operand.hbm [shape: f32[8,128], index: 8, kind: output, shape index: {}]
  %s9 = sld [smem:[#allocation0]]
  $region54: #{tpu_custom_call.1} parent=0
    _
  %s11 = ssub.s32 1, %s9
  %s12 = scalar_select 0, %s11, %s9
  $region1: #{tpu_custom_call.1} parent=0
    #allocation2 [shape = 'u8[262144]{0}', space=vmem, size = 0x40000, scoped, tag = 'input window, operand 2, single buffered']
    #allocation3 [shape = 's32[1]{0}', space=sflag, size = 0x4, scoped, tag = 'scoped memory for tpu_custom_call.1']
    #allocation4 [shape = 's32[1]{0}', space=sflag, size = 0x4, scoped, tag = 'scoped memory for tpu_custom_call.1']
    #allocation5 [shape = 'u8[65536]{0}', space=vmem, size = 0x10000, scoped, tag = 'input window, operand 4, single buffered']
    #allocation6 [shape = 's32[1]{0}', space=sflag, size = 0x4, scoped, tag = 'scoped memory for tpu_custom_call.1']
    #allocation7 [shape = 'u8[65536]{0}', space=vmem, size = 0x10000, scoped, tag = 'input window, operand 6, single buffered']
    #allocation8 [shape = 'u8[4096]{0}', space=vmem, size = 0x1000, scoped, tag = 'output window, operand 0, single buffered']
    %13 = vsyncpa [#allocation3], 0
    %14 = vsyncpa [#allocation6], 0
    %15 = vsyncpa [#allocation4], 0
    // Predicated region
    $region2: #{tpu_custom_call.1} parent=1 // pred_check
      _
    $region3: #{tpu_custom_call.1} parent=1 // pred_check_branch
      %17 = sbr.rel (0) target = $region5
    $region4: #{tpu_custom_call.1} parent=1 // pred_region
      _
    $region5: #{tpu_custom_call.1} parent=1 // pred_fallthru
      _
    // Predicated region
    $region6: #{tpu_custom_call.1} parent=1 // pred_check
      _
    $region7: #{tpu_custom_call.1} parent=1 // pred_check_branch
      %19 = sbr.rel (0) target = $region9
    $region8: #{tpu_custom_call.1} parent=1 // pred_region
      _
    $region9: #{tpu_custom_call.1} parent=1 // pred_fallthru
      _
    // Predicated region
    $region10: #{tpu_custom_call.1} parent=1 // pred_check
      _
    $region11: #{tpu_custom_call.1} parent=1 // pred_check_branch
      %21 = sbr.rel (0) target = $region13
    $region12: #{tpu_custom_call.1} parent=1 // pred_region
      %23 = vsyncadd [#allocation3], 0
      %s24 = sshll.u32 %s2, 4
      %s25 = int_to_ptr.hbm [resolvable:$true] %s24
      %s26 = sshll.u32 [#allocation2], 4
      %s27 = int_to_ptr.vmem [resolvable:$true] %s26
      %32 = dma.hbm_to_vmem [thread:$0]  %s25, 8192, %s27, [#allocation3], 512, 512, 32
    $region13: #{tpu_custom_call.1} parent=1 // pred_fallthru
      _
    // Predicated region
    $region14: #{tpu_custom_call.1} parent=1 // pred_check
      _
    $region15: #{tpu_custom_call.1} parent=1 // pred_check_branch
      %34 = sbr.rel (0) target = $region17
    $region16: #{tpu_custom_call.1} parent=1 // pred_region
      _
    $region17: #{tpu_custom_call.1} parent=1 // pred_fallthru
      _
    // Predicated region
    $region18: #{tpu_custom_call.1} parent=1 // pred_check
      _
    $region19: #{tpu_custom_call.1} parent=1 // pred_check_branch
      %36 = sbr.rel (0) target = $region21
    $region20: #{tpu_custom_call.1} parent=1 // pred_region
      %38 = vsyncadd [#allocation6], 0
      %s39 = sshll.u32 %s4, 4
      %s40 = int_to_ptr.hbm [resolvable:$true] %s39
      %s41 = sshll.u32 [#allocation5], 4
      %s42 = int_to_ptr.vmem [resolvable:$true] %s41
      %47 = dma.hbm_to_vmem [thread:$0]  %s40, 2048, %s42, [#allocation6], 128, 128, 8
    $region21: #{tpu_custom_call.1} parent=1 // pred_fallthru
      _
    // Predicated region
    $region22: #{tpu_custom_call.1} parent=1 // pred_check
      _
    $region23: #{tpu_custom_call.1} parent=1 // pred_check_branch
      %49 = sbr.rel (0) target = $region25
    $region24: #{tpu_custom_call.1} parent=1 // pred_region
      _
    $region25: #{tpu_custom_call.1} parent=1 // pred_fallthru
      _
    // Predicated region
    $region26: #{tpu_custom_call.1} parent=1 // pred_check
      _
    $region27: #{tpu_custom_call.1} parent=1 // pred_check_branch
      %51 = sbr.rel (0) target = $region29
    $region28: #{tpu_custom_call.1} parent=1 // pred_region
      %53 = vsyncadd [#allocation6], 0
      %s54 = sshll.u32 %s6, 4
      %s55 = int_to_ptr.hbm [resolvable:$true] %s54
      %s56 = sshll.u32 [#allocation7], 4
      %s57 = int_to_ptr.vmem [resolvable:$true] %s56
      %62 = dma.hbm_to_vmem [thread:$0]  %s55, 2048, %s57, [#allocation6], 128, 128, 8
    $region29: #{tpu_custom_call.1} parent=1 // pred_fallthru
      _
    // Predicated region
    $region30: #{tpu_custom_call.1} parent=1 // pred_check
      _
    $region31: #{tpu_custom_call.1} parent=1 // pred_check_branch
      %64 = sbr.rel (0) target = $region33
    $region32: #{tpu_custom_call.1} parent=1 // pred_region
      _
    $region33: #{tpu_custom_call.1} parent=1 // pred_fallthru
      _
    // Predicated region
    $region34: #{tpu_custom_call.1} parent=1 // pred_check
      _
    $region35: #{tpu_custom_call.1} parent=1 // pred_check_branch
      %66 = sbr.rel (0) target = $region37
    $region36: #{tpu_custom_call.1} parent=1 // pred_region
      %68 = dma.done [#allocation3], 8192
    $region37: #{tpu_custom_call.1} parent=1 // pred_fallthru
      _
    // Predicated region
    $region38: #{tpu_custom_call.1} parent=1 // pred_check
      _
    $region39: #{tpu_custom_call.1} parent=1 // pred_check_branch
      %70 = sbr.rel (0) target = $region41
    $region40: #{tpu_custom_call.1} parent=1 // pred_region
      %72 = dma.done [#allocation6], 2048
    $region41: #{tpu_custom_call.1} parent=1 // pred_fallthru
      _
    // Predicated region
    $region42: #{tpu_custom_call.1} parent=1 // pred_check
      _
    $region43: #{tpu_custom_call.1} parent=1 // pred_check_branch
      %74 = sbr.rel (0) target = $region45
    $region44: #{tpu_custom_call.1} parent=1 // pred_region
      %76 = dma.done [#allocation6], 2048
    $region45: #{tpu_custom_call.1} parent=1 // pred_fallthru
      _
    %v77 = vld [vmem:[%s1] sm:$0xff]
    %v78 = vld [vmem:[%s1 + $0x8] sm:$0xff]
    %v79 = vld [vmem:[%s1 + $0x10] sm:$0xff]
    %v80 = vld [vmem:[%s1 + $0x18] sm:$0xff]
    %v81 = vld [vmem:[%s1 + $0x20] sm:$0x1]
    %v82 = vld [vmem:[%s1 + $0x28] sm:$0x1]
    %v83 = vld [vmem:[%s1 + $0x30] sm:$0x1]
    %v84 = vld [vmem:[%s1 + $0x38] sm:$0x1]
    %v85 = vld [vmem:[#allocation2] sm:$0xff]
    %v86 = vld [vmem:[#allocation2 + $0x8] sm:$0xff]
    %v87 = vld [vmem:[#allocation2 + $0x10] sm:$0xff]
    %v88 = vld [vmem:[#allocation2 + $0x18] sm:$0xff]
    %v89 = vld [vmem:[#allocation2 + $0x20] sm:$0xff]
    %v90 = vld [vmem:[#allocation2 + $0x28] sm:$0xff]
    %v91 = vld [vmem:[#allocation2 + $0x30] sm:$0xff]
    %v92 = vld [vmem:[#allocation2 + $0x38] sm:$0xff]
    %v93 = vld [vmem:[#allocation2 + $0x40] sm:$0xff]
    %v94 = vld [vmem:[#allocation2 + $0x48] sm:$0xff]
    %v95 = vld [vmem:[#allocation2 + $0x50] sm:$0xff]
    %v96 = vld [vmem:[#allocation2 + $0x58] sm:$0xff]
    %v97 = vld [vmem:[#allocation2 + $0x60] sm:$0xff]
    %v98 = vld [vmem:[#allocation2 + $0x68] sm:$0xff]
    %v99 = vld [vmem:[#allocation2 + $0x70] sm:$0xff]
    %v100 = vld [vmem:[#allocation2 + $0x78] sm:$0xff]
    %v101 = vld [vmem:[#allocation2 + $0x80] sm:$0xff]
    %v102 = vld [vmem:[#allocation2 + $0x88] sm:$0xff]
    %v103 = vld [vmem:[#allocation2 + $0x90] sm:$0xff]
    %v104 = vld [vmem:[#allocation2 + $0x98] sm:$0xff]
    %v105 = vld [vmem:[#allocation2 + $0xa0] sm:$0xff]
    %v106 = vld [vmem:[#allocation2 + $0xa8] sm:$0xff]
    %v107 = vld [vmem:[#allocation2 + $0xb0] sm:$0xff]
    %v108 = vld [vmem:[#allocation2 + $0xb8] sm:$0xff]
    %v109 = vld [vmem:[#allocation2 + $0xc0] sm:$0xff]
    %v110 = vld [vmem:[#allocation2 + $0xc8] sm:$0xff]
    %v111 = vld [vmem:[#allocation2 + $0xd0] sm:$0xff]
    %v112 = vld [vmem:[#allocation2 + $0xd8] sm:$0xff]
    %v113 = vld [vmem:[#allocation2 + $0xe0] sm:$0xff]
    %v114 = vld [vmem:[#allocation2 + $0xe8] sm:$0xff]
    %v115 = vld [vmem:[#allocation2 + $0xf0] sm:$0xff]
    %v116 = vld [vmem:[#allocation2 + $0xf8] sm:$0xff]
    %v117 = vld [vmem:[#allocation2 + $0x100] sm:$0xff]
    %v118 = vld [vmem:[#allocation2 + $0x108] sm:$0xff]
    %v119 = vld [vmem:[#allocation2 + $0x110] sm:$0xff]
    %v120 = vld [vmem:[#allocation2 + $0x118] sm:$0xff]
    %v121 = vld [vmem:[#allocation2 + $0x120] sm:$0xff]
    %v122 = vld [vmem:[#allocation2 + $0x128] sm:$0xff]
    %v123 = vld [vmem:[#allocation2 + $0x130] sm:$0xff]
    %v124 = vld [vmem:[#allocation2 + $0x138] sm:$0xff]
    %v125 = vld [vmem:[#allocation2 + $0x140] sm:$0xff]
    %v126 = vld [vmem:[#allocation2 + $0x148] sm:$0xff]
    %v127 = vld [vmem:[#allocation2 + $0x150] sm:$0xff]
    %v128 = vld [vmem:[#allocation2 + $0x158] sm:$0xff]
    %v129 = vld [vmem:[#allocation2 + $0x160] sm:$0xff]
    %v130 = vld [vmem:[#allocation2 + $0x168] sm:$0xff]
    %v131 = vld [vmem:[#allocation2 + $0x170] sm:$0xff]
    %v132 = vld [vmem:[#allocation2 + $0x178] sm:$0xff]
    %v133 = vld [vmem:[#allocation2 + $0x180] sm:$0xff]
    %v134 = vld [vmem:[#allocation2 + $0x188] sm:$0xff]
    %v135 = vld [vmem:[#allocation2 + $0x190] sm:$0xff]
    %v136 = vld [vmem:[#allocation2 + $0x198] sm:$0xff]
    %v137 = vld [vmem:[#allocation2 + $0x1a0] sm:$0xff]
    %v138 = vld [vmem:[#allocation2 + $0x1a8] sm:$0xff]
    %v139 = vld [vmem:[#allocation2 + $0x1b0] sm:$0xff]
    %v140 = vld [vmem:[#allocation2 + $0x1b8] sm:$0xff]
    %v141 = vld [vmem:[#allocation2 + $0x1c0] sm:$0xff]
    %v142 = vld [vmem:[#allocation2 + $0x1c8] sm:$0xff]
    %v143 = vld [vmem:[#allocation2 + $0x1d0] sm:$0xff]
    %v144 = vld [vmem:[#allocation2 + $0x1d8] sm:$0xff]
    %v145 = vld [vmem:[#allocation2 + $0x1e0] sm:$0xff]
    %v146 = vld [vmem:[#allocation2 + $0x1e8] sm:$0xff]
    %v147 = vld [vmem:[#allocation2 + $0x1f0] sm:$0xff]
    %v148 = vld [vmem:[#allocation2 + $0x1f8] sm:$0xff]
    %v149 = vld [vmem:[%s0] sm:$0xff]
    %v150 = vld [vmem:[%s0 + $0x8] sm:$0xff]
    %v151 = vld [vmem:[%s0 + $0x10] sm:$0xff]
    %v152 = vld [vmem:[%s0 + $0x18] sm:$0xff]
    %v153 = vld [vmem:[%s0 + $0x20] sm:$0xff]
    %v154 = vld [vmem:[%s0 + $0x28] sm:$0xff]
    %v155 = vld [vmem:[%s0 + $0x30] sm:$0xff]
    %v156 = vld [vmem:[%s0 + $0x38] sm:$0xff]
    %v157 = vld [vmem:[%s3] sm:$0xf]
    %v159 = vperm.slane %v157, 0
    %v160 = vperm.slane %v157, 1
    %v161 = vperm.slane %v157, 2
    %v162 = vperm.slane %v157, 3
    %vm167 = vcmask 72704
    %v169 = vsel %vm167, %v149, 0
    %v172 = vsel %vm167, %v150, 0
    %v175 = vsel %vm167, %v151, 0
    %v178 = vsel %vm167, %v152, 0
    %v181 = vsel %vm167, %v153, 0
    %v184 = vsel %vm167, %v154, 0
    %v187 = vsel %vm167, %v155, 0
    %v190 = vsel %vm167, %v156, 0
    %vm192 = vcmask 1040384
    %v194 = vsel %vm192, %v81, 0
    %v197 = vsel %vm192, %v82, 0
    %v200 = vsel %vm192, %v83, 0
    %v203 = vsel %vm192, %v84, 0
    %205 = vmatpush.msra.mxu0 0.0
    %206 = vmatpush.msra.mxu0 0.0
    %207 = vmatpush.msra.mxu0 0.0
    %208 = vmatpush.msra.mxu0 0.0
    %209 = vmatpush.msra.mxu0 0.0
    %210 = vmatpush.msra.mxu0 0.0
    %211 = vmatpush.msra.mxu0 0.0
    %212 = vmatpush.msra.mxu0 0.0
    %213 = vmatpush.msra.mxu0 0.0
    %214 = vmatpush.msra.mxu0 0.0
    %215 = vmatpush.msra.mxu0 0.0
    %216 = vmatpush.msra.mxu0 0.0
    %217 = vmatpush.msra.mxu0 0.0
    %218 = vmatpush.msra.mxu0 0.0
    %219 = vmatpush.msra.mxu0 %v194
    %220 = vmatpush.msra.mxu0 %v77
    %221 = vmatmul.f32.gmra.mxu0 %v169
    %v222 = vpop.f32.mrf.mxu0
    %v223 = vadd.f32 %v159, %v222
    %224 = vmatmul.f32.gmra.mxu0 %v172
    %v225 = vpop.f32.mrf.mxu0
    %v226 = vadd.f32 %v159, %v225
    %227 = vmatmul.f32.gmra.mxu0 %v175
    %v228 = vpop.f32.mrf.mxu0
    %v229 = vadd.f32 %v159, %v228
    %230 = vmatmul.f32.gmra.mxu0 %v178
    %v231 = vpop.f32.mrf.mxu0
    %v232 = vadd.f32 %v159, %v231
    %233 = vmatmul.f32.gmra.mxu0 %v181
    %v234 = vpop.f32.mrf.mxu0
    %v235 = vadd.f32 %v159, %v234
    %236 = vmatmul.f32.gmra.mxu0 %v184
    %v237 = vpop.f32.mrf.mxu0
    %v238 = vadd.f32 %v159, %v237
    %239 = vmatmul.f32.gmra.mxu0 %v187
    %v240 = vpop.f32.mrf.mxu0
    %v241 = vadd.f32 %v159, %v240
    %242 = vmatmul.f32.gmra.mxu0 %v190
    %v243 = vpop.f32.mrf.mxu0
    %v244 = vadd.f32 %v159, %v243
    %245 = vdwg.mxu0
    %246 = vmatpush.msra.mxu0 0.0
    %247 = vmatpush.msra.mxu0 0.0
    %248 = vmatpush.msra.mxu0 0.0
    %249 = vmatpush.msra.mxu0 0.0
    %250 = vmatpush.msra.mxu0 0.0
    %251 = vmatpush.msra.mxu0 0.0
    %252 = vmatpush.msra.mxu0 0.0
    %253 = vmatpush.msra.mxu0 0.0
    %254 = vmatpush.msra.mxu0 0.0
    %255 = vmatpush.msra.mxu0 0.0
    %256 = vmatpush.msra.mxu0 0.0
    %257 = vmatpush.msra.mxu0 0.0
    %258 = vmatpush.msra.mxu0 0.0
    %259 = vmatpush.msra.mxu0 0.0
    %260 = vmatpush.msra.mxu0 %v197
    %261 = vmatpush.msra.mxu0 %v78
    %262 = vmatmul.f32.gmra.mxu0 %v169
    %v263 = vpop.f32.mrf.mxu0
    %v264 = vadd.f32 %v160, %v263
    %265 = vmatmul.f32.gmra.mxu0 %v172
    %v266 = vpop.f32.mrf.mxu0
    %v267 = vadd.f32 %v160, %v266
    %268 = vmatmul.f32.gmra.mxu0 %v175
    %v269 = vpop.f32.mrf.mxu0
    %v270 = vadd.f32 %v160, %v269
    %271 = vmatmul.f32.gmra.mxu0 %v178
    %v272 = vpop.f32.mrf.mxu0
    %v273 = vadd.f32 %v160, %v272
    %274 = vmatmul.f32.gmra.mxu0 %v181
    %v275 = vpop.f32.mrf.mxu0
    %v276 = vadd.f32 %v160, %v275
    %277 = vmatmul.f32.gmra.mxu0 %v184
    %v278 = vpop.f32.mrf.mxu0
    %v279 = vadd.f32 %v160, %v278
    %280 = vmatmul.f32.gmra.mxu0 %v187
    %v281 = vpop.f32.mrf.mxu0
    %v282 = vadd.f32 %v160, %v281
    %283 = vmatmul.f32.gmra.mxu0 %v190
    %v284 = vpop.f32.mrf.mxu0
    %v285 = vadd.f32 %v160, %v284
    %286 = vdwg.mxu0
    %287 = vmatpush.msra.mxu0 0.0
    %288 = vmatpush.msra.mxu0 0.0
    %289 = vmatpush.msra.mxu0 0.0
    %290 = vmatpush.msra.mxu0 0.0
    %291 = vmatpush.msra.mxu0 0.0
    %292 = vmatpush.msra.mxu0 0.0
    %293 = vmatpush.msra.mxu0 0.0
    %294 = vmatpush.msra.mxu0 0.0
    %295 = vmatpush.msra.mxu0 0.0
    %296 = vmatpush.msra.mxu0 0.0
    %297 = vmatpush.msra.mxu0 0.0
    %298 = vmatpush.msra.mxu0 0.0
    %299 = vmatpush.msra.mxu0 0.0
    %300 = vmatpush.msra.mxu0 0.0
    %301 = vmatpush.msra.mxu0 %v200
    %302 = vmatpush.msra.mxu0 %v79
    %303 = vmatmul.f32.gmra.mxu0 %v169
    %v304 = vpop.f32.mrf.mxu0
    %v305 = vadd.f32 %v161, %v304
    %306 = vmatmul.f32.gmra.mxu0 %v172
    %v307 = vpop.f32.mrf.mxu0
    %v308 = vadd.f32 %v161, %v307
    %309 = vmatmul.f32.gmra.mxu0 %v175
    %v310 = vpop.f32.mrf.mxu0
    %v311 = vadd.f32 %v161, %v310
    %312 = vmatmul.f32.gmra.mxu0 %v178
    %v313 = vpop.f32.mrf.mxu0
    %v314 = vadd.f32 %v161, %v313
    %315 = vmatmul.f32.gmra.mxu0 %v181
    %v316 = vpop.f32.mrf.mxu0
    %v317 = vadd.f32 %v161, %v316
    %318 = vmatmul.f32.gmra.mxu0 %v184
    %v319 = vpop.f32.mrf.mxu0
    %v320 = vadd.f32 %v161, %v319
    %321 = vmatmul.f32.gmra.mxu0 %v187
    %v322 = vpop.f32.mrf.mxu0
    %v323 = vadd.f32 %v161, %v322
    %324 = vmatmul.f32.gmra.mxu0 %v190
    %v325 = vpop.f32.mrf.mxu0
    %v326 = vadd.f32 %v161, %v325
    %327 = vdwg.mxu0
    %328 = vmatpush.msra.mxu0 0.0
    %329 = vmatpush.msra.mxu0 0.0
    %330 = vmatpush.msra.mxu0 0.0
    %331 = vmatpush.msra.mxu0 0.0
    %332 = vmatpush.msra.mxu0 0.0
    %333 = vmatpush.msra.mxu0 0.0
    %334 = vmatpush.msra.mxu0 0.0
    %335 = vmatpush.msra.mxu0 0.0
    %336 = vmatpush.msra.mxu0 0.0
    %337 = vmatpush.msra.mxu0 0.0
    %338 = vmatpush.msra.mxu0 0.0
    %339 = vmatpush.msra.mxu0 0.0
    %340 = vmatpush.msra.mxu0 0.0
    %341 = vmatpush.msra.mxu0 0.0
    %342 = vmatpush.msra.mxu0 %v203
    %343 = vmatpush.msra.mxu0 %v80
    %344 = vmatmul.f32.gmra.mxu0 %v169
    %v345 = vpop.f32.mrf.mxu0
    %v346 = vadd.f32 %v162, %v345
    %347 = vmatmul.f32.gmra.mxu0 %v172
    %v348 = vpop.f32.mrf.mxu0
    %v349 = vadd.f32 %v162, %v348
    %350 = vmatmul.f32.gmra.mxu0 %v175
    %v351 = vpop.f32.mrf.mxu0
    %v352 = vadd.f32 %v162, %v351
    %353 = vmatmul.f32.gmra.mxu0 %v178
    %v354 = vpop.f32.mrf.mxu0
    %v355 = vadd.f32 %v162, %v354
    %356 = vmatmul.f32.gmra.mxu0 %v181
    %v357 = vpop.f32.mrf.mxu0
    %v358 = vadd.f32 %v162, %v357
    %359 = vmatmul.f32.gmra.mxu0 %v184
    %v360 = vpop.f32.mrf.mxu0
    %v361 = vadd.f32 %v162, %v360
    %362 = vmatmul.f32.gmra.mxu0 %v187
    %v363 = vpop.f32.mrf.mxu0
    %v364 = vadd.f32 %v162, %v363
    %365 = vmatmul.f32.gmra.mxu0 %v190
    %v366 = vpop.f32.mrf.mxu0
    %v367 = vadd.f32 %v162, %v366
    %368 = vdwg.mxu0
    %369 = vmatpush.msra.mxu0 %v145
    %370 = vmatpush.msra.mxu0 %v141
    %371 = vmatpush.msra.mxu0 %v137
    %372 = vmatpush.msra.mxu0 %v133
    %373 = vmatpush.msra.mxu0 %v129
    %374 = vmatpush.msra.mxu0 %v125
    %375 = vmatpush.msra.mxu0 %v121
    %376 = vmatpush.msra.mxu0 %v117
    %377 = vmatpush.msra.mxu0 %v113
    %378 = vmatpush.msra.mxu0 %v109
    %379 = vmatpush.msra.mxu0 %v105
    %380 = vmatpush.msra.mxu0 %v101
    %381 = vmatpush.msra.mxu0 %v97
    %382 = vmatpush.msra.mxu0 %v93
    %383 = vmatpush.msra.mxu0 %v89
    %384 = vmatpush.msra.mxu0 %v85
    %385 = vmatmul.f32.gmra.mxu0 0.0
    %v386 = vpop.f32.mrf.mxu0
    %v387 = vadd.f32 0.0, %v386
    %388 = vdwg.mxu0
    %389 = vmatpush.msra.mxu0 %v146
    %390 = vmatpush.msra.mxu0 %v142
    %391 = vmatpush.msra.mxu0 %v138
    %392 = vmatpush.msra.mxu0 %v134
    %393 = vmatpush.msra.mxu0 %v130
    %394 = vmatpush.msra.mxu0 %v126
    %395 = vmatpush.msra.mxu0 %v122
    %396 = vmatpush.msra.mxu0 %v118
    %397 = vmatpush.msra.mxu0 %v114
    %398 = vmatpush.msra.mxu0 %v110
    %399 = vmatpush.msra.mxu0 %v106
    %400 = vmatpush.msra.mxu0 %v102
    %401 = vmatpush.msra.mxu0 %v98
    %402 = vmatpush.msra.mxu0 %v94
    %403 = vmatpush.msra.mxu0 %v90
    %404 = vmatpush.msra.mxu0 %v86
    %405 = vmatmul.f32.gmra.mxu0 0.0
    %v406 = vpop.f32.mrf.mxu0
    %v407 = vadd.f32 0.0, %v406
    %408 = vdwg.mxu0
    %409 = vmatpush.msra.mxu0 %v147
    %410 = vmatpush.msra.mxu0 %v143
    %411 = vmatpush.msra.mxu0 %v139
    %412 = vmatpush.msra.mxu0 %v135
    %413 = vmatpush.msra.mxu0 %v131
    %414 = vmatpush.msra.mxu0 %v127
    %415 = vmatpush.msra.mxu0 %v123
    %416 = vmatpush.msra.mxu0 %v119
    %417 = vmatpush.msra.mxu0 %v115
    %418 = vmatpush.msra.mxu0 %v111
    %419 = vmatpush.msra.mxu0 %v107
    %420 = vmatpush.msra.mxu0 %v103
    %421 = vmatpush.msra.mxu0 %v99
    %422 = vmatpush.msra.mxu0 %v95
    %423 = vmatpush.msra.mxu0 %v91
    %424 = vmatpush.msra.mxu0 %v87
    %425 = vmatmul.f32.gmra.mxu0 0.0
    %v426 = vpop.f32.mrf.mxu0
    %v427 = vadd.f32 0.0, %v426
    %428 = vdwg.mxu0
    %429 = vmatpush.msra.mxu0 %v148
    %430 = vmatpush.msra.mxu0 %v144
    %431 = vmatpush.msra.mxu0 %v140
    %432 = vmatpush.msra.mxu0 %v136
    %433 = vmatpush.msra.mxu0 %v132
    %434 = vmatpush.msra.mxu0 %v128
    %435 = vmatpush.msra.mxu0 %v124
    %436 = vmatpush.msra.mxu0 %v120
    %437 = vmatpush.msra.mxu0 %v116
    %438 = vmatpush.msra.mxu0 %v112
    %439 = vmatpush.msra.mxu0 %v108
    %440 = vmatpush.msra.mxu0 %v104
    %441 = vmatpush.msra.mxu0 %v100
    %442 = vmatpush.msra.mxu0 %v96
    %443 = vmatpush.msra.mxu0 %v92
    %444 = vmatpush.msra.mxu0 %v88
    %445 = vmatmul.f32.gmra.mxu0 0.0
    %v446 = vpop.f32.mrf.mxu0
    %v447 = vadd.f32 0.0, %v446
    %448 = vdwg.mxu0
    %v449 = vadd.f32 %v223, %v387
    %v450 = vadd.f32 %v264, %v407
    %v451 = vadd.f32 %v305, %v427
    %v452 = vadd.f32 %v346, %v447
    %v453 = vxor.u32 %v449, 2147483648
    %v454 = vmul.f32 %v453, 1.442695
    %v455 = vpow.pop %v454
    %v456 = vadd.f32 %v455, 1.0
    %v457 = vrcp.pop %v456
    %v458 = vmul.f32 %v456, %v457
    %v459 = vsub.f32 1.0, %v458
    %v460 = vmul.f32 %v457, %v459
    %v461 = vadd.f32 %v457, %v460
    %vm462 = vweird.f32 %v456
    %vm463 = vweird.f32 %v457
    %vm464 = vmor %vm462, %vm463
    %v465 = vsel %vm464, %v457, %v461
    %v466 = vand.u32 2147483647, %v456
    %vm467 = vcmp.eq.f32.partialorder %v466, 8.507059e+37
    %v468 = vand.u32 %v456, 2147483648
    %v469 = vor.u32 1.1754944e-38, %v468
    %v470 = vsel %vm467, %v469, %v465
    %v471 = vmul.f32 1.0, %v470
    %v472 = vxor.u32 %v450, 2147483648
    %v473 = vmul.f32 %v472, 1.442695
    %v474 = vpow.pop %v473
    %v475 = vadd.f32 %v474, 1.0
    %v476 = vrcp.pop %v475
    %v477 = vmul.f32 %v475, %v476
    %v478 = vsub.f32 1.0, %v477
    %v479 = vmul.f32 %v476, %v478
    %v480 = vadd.f32 %v476, %v479
    %vm481 = vweird.f32 %v475
    %vm482 = vweird.f32 %v476
    %vm483 = vmor %vm481, %vm482
    %v484 = vsel %vm483, %v476, %v480
    %v485 = vand.u32 2147483647, %v475
    %vm486 = vcmp.eq.f32.partialorder %v485, 8.507059e+37
    %v487 = vand.u32 %v475, 2147483648
    %v488 = vor.u32 1.1754944e-38, %v487
    %v489 = vsel %vm486, %v488, %v484
    %v490 = vmul.f32 1.0, %v489
    %v491 = vtanh.pop %v451
    %v492 = vxor.u32 %v452, 2147483648
    %v493 = vmul.f32 %v492, 1.442695
    %v494 = vpow.pop %v493
    %v495 = vadd.f32 %v494, 1.0
    %v496 = vrcp.pop %v495
    %v497 = vmul.f32 %v495, %v496
    %v498 = vsub.f32 1.0, %v497
    %v499 = vmul.f32 %v496, %v498
    %v500 = vadd.f32 %v496, %v499
    %vm501 = vweird.f32 %v495
    %vm502 = vweird.f32 %v496
    %vm503 = vmor %vm501, %vm502
    %v504 = vsel %vm503, %v496, %v500
    %v505 = vand.u32 2147483647, %v495
    %vm506 = vcmp.eq.f32.partialorder %v505, 8.507059e+37
    %v507 = vand.u32 %v495, 2147483648
    %v508 = vor.u32 1.1754944e-38, %v507
    %v509 = vsel %vm506, %v508, %v504
    %v510 = vmul.f32 1.0, %v509
    %v511 = vmul.f32 %v490, 0.0
    %v512 = vmul.f32 %v471, %v491
    %v513 = vadd.f32 %v511, %v512
    %v514 = vtanh.pop %v513
    %v515 = vmul.f32 %v510, %v514
    %516 = vmatpush.msra.mxu0 %v145
    %517 = vmatpush.msra.mxu0 %v141
    %518 = vmatpush.msra.mxu0 %v137
    %519 = vmatpush.msra.mxu0 %v133
    %520 = vmatpush.msra.mxu0 %v129
    %521 = vmatpush.msra.mxu0 %v125
    %522 = vmatpush.msra.mxu0 %v121
    %523 = vmatpush.msra.mxu0 %v117
    %524 = vmatpush.msra.mxu0 %v113
    %525 = vmatpush.msra.mxu0 %v109
    %526 = vmatpush.msra.mxu0 %v105
    %527 = vmatpush.msra.mxu0 %v101
    %528 = vmatpush.msra.mxu0 %v97
    %529 = vmatpush.msra.mxu0 %v93
    %530 = vmatpush.msra.mxu0 %v89
    %531 = vmatpush.msra.mxu0 %v85
    %532 = vmatmul.f32.gmra.mxu0 %v515
    %v533 = vpop.f32.mrf.mxu0
    %v534 = vadd.f32 0.0, %v533
    %535 = vdwg.mxu0
    %536 = vmatpush.msra.mxu0 %v146
    %537 = vmatpush.msra.mxu0 %v142
    %538 = vmatpush.msra.mxu0 %v138
    %539 = vmatpush.msra.mxu0 %v134
    %540 = vmatpush.msra.mxu0 %v130
    %541 = vmatpush.msra.mxu0 %v126
    %542 = vmatpush.msra.mxu0 %v122
    %543 = vmatpush.msra.mxu0 %v118
    %544 = vmatpush.msra.mxu0 %v114
    %545 = vmatpush.msra.mxu0 %v110
    %546 = vmatpush.msra.mxu0 %v106
    %547 = vmatpush.msra.mxu0 %v102
    %548 = vmatpush.msra.mxu0 %v98
    %549 = vmatpush.msra.mxu0 %v94
    %550 = vmatpush.msra.mxu0 %v90
    %551 = vmatpush.msra.mxu0 %v86
    %552 = vmatmul.f32.gmra.mxu0 %v515
    %v553 = vpop.f32.mrf.mxu0
    %v554 = vadd.f32 0.0, %v553
    %555 = vdwg.mxu0
    %556 = vmatpush.msra.mxu0 %v147
    %557 = vmatpush.msra.mxu0 %v143
    %558 = vmatpush.msra.mxu0 %v139
    %559 = vmatpush.msra.mxu0 %v135
    %560 = vmatpush.msra.mxu0 %v131
    %561 = vmatpush.msra.mxu0 %v127
    %562 = vmatpush.msra.mxu0 %v123
    %563 = vmatpush.msra.mxu0 %v119
    %564 = vmatpush.msra.mxu0 %v115
    %565 = vmatpush.msra.mxu0 %v111
    %566 = vmatpush.msra.mxu0 %v107
    %567 = vmatpush.msra.mxu0 %v103
    %568 = vmatpush.msra.mxu0 %v99
    %569 = vmatpush.msra.mxu0 %v95
    %570 = vmatpush.msra.mxu0 %v91
    %571 = vmatpush.msra.mxu0 %v87
    %572 = vmatmul.f32.gmra.mxu0 %v515
    %v573 = vpop.f32.mrf.mxu0
    %v574 = vadd.f32 0.0, %v573
    %575 = vdwg.mxu0
    %576 = vmatpush.msra.mxu0 %v148
    %577 = vmatpush.msra.mxu0 %v144
    %578 = vmatpush.msra.mxu0 %v140
    %579 = vmatpush.msra.mxu0 %v136
    %580 = vmatpush.msra.mxu0 %v132
    %581 = vmatpush.msra.mxu0 %v128
    %582 = vmatpush.msra.mxu0 %v124
    %583 = vmatpush.msra.mxu0 %v120
    %584 = vmatpush.msra.mxu0 %v116
    %585 = vmatpush.msra.mxu0 %v112
    %586 = vmatpush.msra.mxu0 %v108
    %587 = vmatpush.msra.mxu0 %v104
    %588 = vmatpush.msra.mxu0 %v100
    %589 = vmatpush.msra.mxu0 %v96
    %590 = vmatpush.msra.mxu0 %v92
    %591 = vmatpush.msra.mxu0 %v88
    %592 = vmatmul.f32.gmra.mxu0 %v515
    %v593 = vpop.f32.mrf.mxu0
    %v594 = vadd.f32 0.0, %v593
    %595 = vdwg.mxu0
    %v596 = vadd.f32 %v226, %v534
    %v597 = vadd.f32 %v267, %v554
    %v598 = vadd.f32 %v308, %v574
    %v599 = vadd.f32 %v349, %v594
    %v600 = vxor.u32 %v596, 2147483648
    %v601 = vmul.f32 %v600, 1.442695
    %v602 = vpow.pop %v601
    %v603 = vadd.f32 %v602, 1.0
    %v604 = vrcp.pop %v603
    %v605 = vmul.f32 %v603, %v604
    %v606 = vsub.f32 1.0, %v605
    %v607 = vmul.f32 %v604, %v606
    %v608 = vadd.f32 %v604, %v607
    %vm609 = vweird.f32 %v603
    %vm610 = vweird.f32 %v604
    %vm611 = vmor %vm609, %vm610
    %v612 = vsel %vm611, %v604, %v608
    %v613 = vand.u32 2147483647, %v603
    %vm614 = vcmp.eq.f32.partialorder %v613, 8.507059e+37
    %v615 = vand.u32 %v603, 2147483648
    %v616 = vor.u32 1.1754944e-38, %v615
    %v617 = vsel %vm614, %v616, %v612
    %v618 = vmul.f32 1.0, %v617
    %v619 = vxor.u32 %v597, 2147483648
    %v620 = vmul.f32 %v619, 1.442695
    %v621 = vpow.pop %v620
    %v622 = vadd.f32 %v621, 1.0
    %v623 = vrcp.pop %v622
    %v624 = vmul.f32 %v622, %v623
    %v625 = vsub.f32 1.0, %v624
    %v626 = vmul.f32 %v623, %v625
    %v627 = vadd.f32 %v623, %v626
    %vm628 = vweird.f32 %v622
    %vm629 = vweird.f32 %v623
    %vm630 = vmor %vm628, %vm629
    %v631 = vsel %vm630, %v623, %v627
    %v632 = vand.u32 2147483647, %v622
    %vm633 = vcmp.eq.f32.partialorder %v632, 8.507059e+37
    %v634 = vand.u32 %v622, 2147483648
    %v635 = vor.u32 1.1754944e-38, %v634
    %v636 = vsel %vm633, %v635, %v631
    %v637 = vmul.f32 1.0, %v636
    %v638 = vtanh.pop %v598
    %v639 = vxor.u32 %v599, 2147483648
    %v640 = vmul.f32 %v639, 1.442695
    %v641 = vpow.pop %v640
    %v642 = vadd.f32 %v641, 1.0
    %v643 = vrcp.pop %v642
    %v644 = vmul.f32 %v642, %v643
    %v645 = vsub.f32 1.0, %v644
    %v646 = vmul.f32 %v643, %v645
    %v647 = vadd.f32 %v643, %v646
    %vm648 = vweird.f32 %v642
    %vm649 = vweird.f32 %v643
    %vm650 = vmor %vm648, %vm649
    %v651 = vsel %vm650, %v643, %v647
    %v652 = vand.u32 2147483647, %v642
    %vm653 = vcmp.eq.f32.partialorder %v652, 8.507059e+37
    %v654 = vand.u32 %v642, 2147483648
    %v655 = vor.u32 1.1754944e-38, %v654
    %v656 = vsel %vm653, %v655, %v651
    %v657 = vmul.f32 1.0, %v656
    %v658 = vmul.f32 %v637, %v513
    %v659 = vmul.f32 %v618, %v638
    %v660 = vadd.f32 %v658, %v659
    %v661 = vtanh.pop %v660
    %v662 = vmul.f32 %v657, %v661
    %663 = vmatpush.msra.mxu0 %v145
    %664 = vmatpush.msra.mxu0 %v141
    %665 = vmatpush.msra.mxu0 %v137
    %666 = vmatpush.msra.mxu0 %v133
    %667 = vmatpush.msra.mxu0 %v129
    %668 = vmatpush.msra.mxu0 %v125
    %669 = vmatpush.msra.mxu0 %v121
    %670 = vmatpush.msra.mxu0 %v117
    %671 = vmatpush.msra.mxu0 %v113
    %672 = vmatpush.msra.mxu0 %v109
    %673 = vmatpush.msra.mxu0 %v105
    %674 = vmatpush.msra.mxu0 %v101
    %675 = vmatpush.msra.mxu0 %v97
    %676 = vmatpush.msra.mxu0 %v93
    %677 = vmatpush.msra.mxu0 %v89
    %678 = vmatpush.msra.mxu0 %v85
    %679 = vmatmul.f32.gmra.mxu0 %v662
    %v680 = vpop.f32.mrf.mxu0
    %v681 = vadd.f32 0.0, %v680
    %682 = vdwg.mxu0
    %683 = vmatpush.msra.mxu0 %v146
    %684 = vmatpush.msra.mxu0 %v142
    %685 = vmatpush.msra.mxu0 %v138
    %686 = vmatpush.msra.mxu0 %v134
    %687 = vmatpush.msra.mxu0 %v130
    %688 = vmatpush.msra.mxu0 %v126
    %689 = vmatpush.msra.mxu0 %v122
    %690 = vmatpush.msra.mxu0 %v118
    %691 = vmatpush.msra.mxu0 %v114
    %692 = vmatpush.msra.mxu0 %v110
    %693 = vmatpush.msra.mxu0 %v106
    %694 = vmatpush.msra.mxu0 %v102
    %695 = vmatpush.msra.mxu0 %v98
    %696 = vmatpush.msra.mxu0 %v94
    %697 = vmatpush.msra.mxu0 %v90
    %698 = vmatpush.msra.mxu0 %v86
    %699 = vmatmul.f32.gmra.mxu0 %v662
    %v700 = vpop.f32.mrf.mxu0
    %v701 = vadd.f32 0.0, %v700
    %702 = vdwg.mxu0
    %703 = vmatpush.msra.mxu0 %v147
    %704 = vmatpush.msra.mxu0 %v143
    %705 = vmatpush.msra.mxu0 %v139
    %706 = vmatpush.msra.mxu0 %v135
    %707 = vmatpush.msra.mxu0 %v131
    %708 = vmatpush.msra.mxu0 %v127
    %709 = vmatpush.msra.mxu0 %v123
    %710 = vmatpush.msra.mxu0 %v119
    %711 = vmatpush.msra.mxu0 %v115
    %712 = vmatpush.msra.mxu0 %v111
    %713 = vmatpush.msra.mxu0 %v107
    %714 = vmatpush.msra.mxu0 %v103
    %715 = vmatpush.msra.mxu0 %v99
    %716 = vmatpush.msra.mxu0 %v95
    %717 = vmatpush.msra.mxu0 %v91
    %718 = vmatpush.msra.mxu0 %v87
    %719 = vmatmul.f32.gmra.mxu0 %v662
    %v720 = vpop.f32.mrf.mxu0
    %v721 = vadd.f32 0.0, %v720
    %722 = vdwg.mxu0
    %723 = vmatpush.msra.mxu0 %v148
    %724 = vmatpush.msra.mxu0 %v144
    %725 = vmatpush.msra.mxu0 %v140
    %726 = vmatpush.msra.mxu0 %v136
    %727 = vmatpush.msra.mxu0 %v132
    %728 = vmatpush.msra.mxu0 %v128
    %729 = vmatpush.msra.mxu0 %v124
    %730 = vmatpush.msra.mxu0 %v120
    %731 = vmatpush.msra.mxu0 %v116
    %732 = vmatpush.msra.mxu0 %v112
    %733 = vmatpush.msra.mxu0 %v108
    %734 = vmatpush.msra.mxu0 %v104
    %735 = vmatpush.msra.mxu0 %v100
    %736 = vmatpush.msra.mxu0 %v96
    %737 = vmatpush.msra.mxu0 %v92
    %738 = vmatpush.msra.mxu0 %v88
    %739 = vmatmul.f32.gmra.mxu0 %v662
    %v740 = vpop.f32.mrf.mxu0
    %v741 = vadd.f32 0.0, %v740
    %742 = vdwg.mxu0
    %v743 = vadd.f32 %v229, %v681
    %v744 = vadd.f32 %v270, %v701
    %v745 = vadd.f32 %v311, %v721
    %v746 = vadd.f32 %v352, %v741
    %v747 = vxor.u32 %v743, 2147483648
    %v748 = vmul.f32 %v747, 1.442695
    %v749 = vpow.pop %v748
    %v750 = vadd.f32 %v749, 1.0
    %v751 = vrcp.pop %v750
    %v752 = vmul.f32 %v750, %v751
    %v753 = vsub.f32 1.0, %v752
    %v754 = vmul.f32 %v751, %v753
    %v755 = vadd.f32 %v751, %v754
    %vm756 = vweird.f32 %v750
    %vm757 = vweird.f32 %v751
    %vm758 = vmor %vm756, %vm757
    %v759 = vsel %vm758, %v751, %v755
    %v760 = vand.u32 2147483647, %v750
    %vm761 = vcmp.eq.f32.partialorder %v760, 8.507059e+37
    %v762 = vand.u32 %v750, 2147483648
    %v763 = vor.u32 1.1754944e-38, %v762
    %v764 = vsel %vm761, %v763, %v759
    %v765 = vmul.f32 1.0, %v764
    %v766 = vxor.u32 %v744, 2147483648
    %v767 = vmul.f32 %v766, 1.442695
    %v768 = vpow.pop %v767
    %v769 = vadd.f32 %v768, 1.0
    %v770 = vrcp.pop %v769
    %v771 = vmul.f32 %v769, %v770
    %v772 = vsub.f32 1.0, %v771
    %v773 = vmul.f32 %v770, %v772
    %v774 = vadd.f32 %v770, %v773
    %vm775 = vweird.f32 %v769
    %vm776 = vweird.f32 %v770
    %vm777 = vmor %vm775, %vm776
    %v778 = vsel %vm777, %v770, %v774
    %v779 = vand.u32 2147483647, %v769
    %vm780 = vcmp.eq.f32.partialorder %v779, 8.507059e+37
    %v781 = vand.u32 %v769, 2147483648
    %v782 = vor.u32 1.1754944e-38, %v781
    %v783 = vsel %vm780, %v782, %v778
    %v784 = vmul.f32 1.0, %v783
    %v785 = vtanh.pop %v745
    %v786 = vxor.u32 %v746, 2147483648
    %v787 = vmul.f32 %v786, 1.442695
    %v788 = vpow.pop %v787
    %v789 = vadd.f32 %v788, 1.0
    %v790 = vrcp.pop %v789
    %v791 = vmul.f32 %v789, %v790
    %v792 = vsub.f32 1.0, %v791
    %v793 = vmul.f32 %v790, %v792
    %v794 = vadd.f32 %v790, %v793
    %vm795 = vweird.f32 %v789
    %vm796 = vweird.f32 %v790
    %vm797 = vmor %vm795, %vm796
    %v798 = vsel %vm797, %v790, %v794
    %v799 = vand.u32 2147483647, %v789
    %vm800 = vcmp.eq.f32.partialorder %v799, 8.507059e+37
    %v801 = vand.u32 %v789, 2147483648
    %v802 = vor.u32 1.1754944e-38, %v801
    %v803 = vsel %vm800, %v802, %v798
    %v804 = vmul.f32 1.0, %v803
    %v805 = vmul.f32 %v784, %v660
    %v806 = vmul.f32 %v765, %v785
    %v807 = vadd.f32 %v805, %v806
    %v808 = vtanh.pop %v807
    %v809 = vmul.f32 %v804, %v808
    %810 = vmatpush.msra.mxu0 %v145
    %811 = vmatpush.msra.mxu0 %v141
    %812 = vmatpush.msra.mxu0 %v137
    %813 = vmatpush.msra.mxu0 %v133
    %814 = vmatpush.msra.mxu0 %v129
    %815 = vmatpush.msra.mxu0 %v125
    %816 = vmatpush.msra.mxu0 %v121
    %817 = vmatpush.msra.mxu0 %v117
    %818 = vmatpush.msra.mxu0 %v113
    %819 = vmatpush.msra.mxu0 %v109
    %820 = vmatpush.msra.mxu0 %v105
    %821 = vmatpush.msra.mxu0 %v101
    %822 = vmatpush.msra.mxu0 %v97
    %823 = vmatpush.msra.mxu0 %v93
    %824 = vmatpush.msra.mxu0 %v89
    %825 = vmatpush.msra.mxu0 %v85
    %826 = vmatmul.f32.gmra.mxu0 %v809
    %v827 = vpop.f32.mrf.mxu0
    %v828 = vadd.f32 0.0, %v827
    %829 = vdwg.mxu0
    %830 = vmatpush.msra.mxu0 %v146
    %831 = vmatpush.msra.mxu0 %v142
    %832 = vmatpush.msra.mxu0 %v138
    %833 = vmatpush.msra.mxu0 %v134
    %834 = vmatpush.msra.mxu0 %v130
    %835 = vmatpush.msra.mxu0 %v126
    %836 = vmatpush.msra.mxu0 %v122
    %837 = vmatpush.msra.mxu0 %v118
    %838 = vmatpush.msra.mxu0 %v114
    %839 = vmatpush.msra.mxu0 %v110
    %840 = vmatpush.msra.mxu0 %v106
    %841 = vmatpush.msra.mxu0 %v102
    %842 = vmatpush.msra.mxu0 %v98
    %843 = vmatpush.msra.mxu0 %v94
    %844 = vmatpush.msra.mxu0 %v90
    %845 = vmatpush.msra.mxu0 %v86
    %846 = vmatmul.f32.gmra.mxu0 %v809
    %v847 = vpop.f32.mrf.mxu0
    %v848 = vadd.f32 0.0, %v847
    %849 = vdwg.mxu0
    %850 = vmatpush.msra.mxu0 %v147
    %851 = vmatpush.msra.mxu0 %v143
    %852 = vmatpush.msra.mxu0 %v139
    %853 = vmatpush.msra.mxu0 %v135
    %854 = vmatpush.msra.mxu0 %v131
    %855 = vmatpush.msra.mxu0 %v127
    %856 = vmatpush.msra.mxu0 %v123
    %857 = vmatpush.msra.mxu0 %v119
    %858 = vmatpush.msra.mxu0 %v115
    %859 = vmatpush.msra.mxu0 %v111
    %860 = vmatpush.msra.mxu0 %v107
    %861 = vmatpush.msra.mxu0 %v103
    %862 = vmatpush.msra.mxu0 %v99
    %863 = vmatpush.msra.mxu0 %v95
    %864 = vmatpush.msra.mxu0 %v91
    %865 = vmatpush.msra.mxu0 %v87
    %866 = vmatmul.f32.gmra.mxu0 %v809
    %v867 = vpop.f32.mrf.mxu0
    %v868 = vadd.f32 0.0, %v867
    %869 = vdwg.mxu0
    %870 = vmatpush.msra.mxu0 %v148
    %871 = vmatpush.msra.mxu0 %v144
    %872 = vmatpush.msra.mxu0 %v140
    %873 = vmatpush.msra.mxu0 %v136
    %874 = vmatpush.msra.mxu0 %v132
    %875 = vmatpush.msra.mxu0 %v128
    %876 = vmatpush.msra.mxu0 %v124
    %877 = vmatpush.msra.mxu0 %v120
    %878 = vmatpush.msra.mxu0 %v116
    %879 = vmatpush.msra.mxu0 %v112
    %880 = vmatpush.msra.mxu0 %v108
    %881 = vmatpush.msra.mxu0 %v104
    %882 = vmatpush.msra.mxu0 %v100
    %883 = vmatpush.msra.mxu0 %v96
    %884 = vmatpush.msra.mxu0 %v92
    %885 = vmatpush.msra.mxu0 %v88
    %886 = vmatmul.f32.gmra.mxu0 %v809
    %v887 = vpop.f32.mrf.mxu0
    %v888 = vadd.f32 0.0, %v887
    %889 = vdwg.mxu0
    %v890 = vadd.f32 %v232, %v828
    %v891 = vadd.f32 %v273, %v848
    %v892 = vadd.f32 %v314, %v868
    %v893 = vadd.f32 %v355, %v888
    %v894 = vxor.u32 %v890, 2147483648
    %v895 = vmul.f32 %v894, 1.442695
    %v896 = vpow.pop %v895
    %v897 = vadd.f32 %v896, 1.0
    %v898 = vrcp.pop %v897
    %v899 = vmul.f32 %v897, %v898
    %v900 = vsub.f32 1.0, %v899
    %v901 = vmul.f32 %v898, %v900
    %v902 = vadd.f32 %v898, %v901
    %vm903 = vweird.f32 %v897
    %vm904 = vweird.f32 %v898
    %vm905 = vmor %vm903, %vm904
    %v906 = vsel %vm905, %v898, %v902
    %v907 = vand.u32 2147483647, %v897
    %vm908 = vcmp.eq.f32.partialorder %v907, 8.507059e+37
    %v909 = vand.u32 %v897, 2147483648
    %v910 = vor.u32 1.1754944e-38, %v909
    %v911 = vsel %vm908, %v910, %v906
    %v912 = vmul.f32 1.0, %v911
    %v913 = vxor.u32 %v891, 2147483648
    %v914 = vmul.f32 %v913, 1.442695
    %v915 = vpow.pop %v914
    %v916 = vadd.f32 %v915, 1.0
    %v917 = vrcp.pop %v916
    %v918 = vmul.f32 %v916, %v917
    %v919 = vsub.f32 1.0, %v918
    %v920 = vmul.f32 %v917, %v919
    %v921 = vadd.f32 %v917, %v920
    %vm922 = vweird.f32 %v916
    %vm923 = vweird.f32 %v917
    %vm924 = vmor %vm922, %vm923
    %v925 = vsel %vm924, %v917, %v921
    %v926 = vand.u32 2147483647, %v916
    %vm927 = vcmp.eq.f32.partialorder %v926, 8.507059e+37
    %v928 = vand.u32 %v916, 2147483648
    %v929 = vor.u32 1.1754944e-38, %v928
    %v930 = vsel %vm927, %v929, %v925
    %v931 = vmul.f32 1.0, %v930
    %v932 = vtanh.pop %v892
    %v933 = vxor.u32 %v893, 2147483648
    %v934 = vmul.f32 %v933, 1.442695
    %v935 = vpow.pop %v934
    %v936 = vadd.f32 %v935, 1.0
    %v937 = vrcp.pop %v936
    %v938 = vmul.f32 %v936, %v937
    %v939 = vsub.f32 1.0, %v938
    %v940 = vmul.f32 %v937, %v939
    %v941 = vadd.f32 %v937, %v940
    %vm942 = vweird.f32 %v936
    %vm943 = vweird.f32 %v937
    %vm944 = vmor %vm942, %vm943
    %v945 = vsel %vm944, %v937, %v941
    %v946 = vand.u32 2147483647, %v936
    %vm947 = vcmp.eq.f32.partialorder %v946, 8.507059e+37
    %v948 = vand.u32 %v936, 2147483648
    %v949 = vor.u32 1.1754944e-38, %v948
    %v950 = vsel %vm947, %v949, %v945
    %v951 = vmul.f32 1.0, %v950
    %v952 = vmul.f32 %v931, %v807
    %v953 = vmul.f32 %v912, %v932
    %v954 = vadd.f32 %v952, %v953
    %v955 = vtanh.pop %v954
    %v956 = vmul.f32 %v951, %v955
    %957 = vmatpush.msra.mxu0 %v145
    %958 = vmatpush.msra.mxu0 %v141
    %959 = vmatpush.msra.mxu0 %v137
    %960 = vmatpush.msra.mxu0 %v133
    %961 = vmatpush.msra.mxu0 %v129
    %962 = vmatpush.msra.mxu0 %v125
    %963 = vmatpush.msra.mxu0 %v121
    %964 = vmatpush.msra.mxu0 %v117
    %965 = vmatpush.msra.mxu0 %v113
    %966 = vmatpush.msra.mxu0 %v109
    %967 = vmatpush.msra.mxu0 %v105
    %968 = vmatpush.msra.mxu0 %v101
    %969 = vmatpush.msra.mxu0 %v97
    %970 = vmatpush.msra.mxu0 %v93
    %971 = vmatpush.msra.mxu0 %v89
    %972 = vmatpush.msra.mxu0 %v85
    %973 = vmatmul.f32.gmra.mxu0 %v956
    %v974 = vpop.f32.mrf.mxu0
    %v975 = vadd.f32 0.0, %v974
    %976 = vdwg.mxu0
    %977 = vmatpush.msra.mxu0 %v146
    %978 = vmatpush.msra.mxu0 %v142
    %979 = vmatpush.msra.mxu0 %v138
    %980 = vmatpush.msra.mxu0 %v134
    %981 = vmatpush.msra.mxu0 %v130
    %982 = vmatpush.msra.mxu0 %v126
    %983 = vmatpush.msra.mxu0 %v122
    %984 = vmatpush.msra.mxu0 %v118
    %985 = vmatpush.msra.mxu0 %v114
    %986 = vmatpush.msra.mxu0 %v110
    %987 = vmatpush.msra.mxu0 %v106
    %988 = vmatpush.msra.mxu0 %v102
    %989 = vmatpush.msra.mxu0 %v98
    %990 = vmatpush.msra.mxu0 %v94
    %991 = vmatpush.msra.mxu0 %v90
    %992 = vmatpush.msra.mxu0 %v86
    %993 = vmatmul.f32.gmra.mxu0 %v956
    %v994 = vpop.f32.mrf.mxu0
    %v995 = vadd.f32 0.0, %v994
    %996 = vdwg.mxu0
    %997 = vmatpush.msra.mxu0 %v147
    %998 = vmatpush.msra.mxu0 %v143
    %999 = vmatpush.msra.mxu0 %v139
    %1000 = vmatpush.msra.mxu0 %v135
    %1001 = vmatpush.msra.mxu0 %v131
    %1002 = vmatpush.msra.mxu0 %v127
    %1003 = vmatpush.msra.mxu0 %v123
    %1004 = vmatpush.msra.mxu0 %v119
    %1005 = vmatpush.msra.mxu0 %v115
    %1006 = vmatpush.msra.mxu0 %v111
    %1007 = vmatpush.msra.mxu0 %v107
    %1008 = vmatpush.msra.mxu0 %v103
    %1009 = vmatpush.msra.mxu0 %v99
    %1010 = vmatpush.msra.mxu0 %v95
    %1011 = vmatpush.msra.mxu0 %v91
    %1012 = vmatpush.msra.mxu0 %v87
    %1013 = vmatmul.f32.gmra.mxu0 %v956
    %v1014 = vpop.f32.mrf.mxu0
    %v1015 = vadd.f32 0.0, %v1014
    %1016 = vdwg.mxu0
    %1017 = vmatpush.msra.mxu0 %v148
    %1018 = vmatpush.msra.mxu0 %v144
    %1019 = vmatpush.msra.mxu0 %v140
    %1020 = vmatpush.msra.mxu0 %v136
    %1021 = vmatpush.msra.mxu0 %v132
    %1022 = vmatpush.msra.mxu0 %v128
    %1023 = vmatpush.msra.mxu0 %v124
    %1024 = vmatpush.msra.mxu0 %v120
    %1025 = vmatpush.msra.mxu0 %v116
    %1026 = vmatpush.msra.mxu0 %v112
    %1027 = vmatpush.msra.mxu0 %v108
    %1028 = vmatpush.msra.mxu0 %v104
    %1029 = vmatpush.msra.mxu0 %v100
    %1030 = vmatpush.msra.mxu0 %v96
    %1031 = vmatpush.msra.mxu0 %v92
    %1032 = vmatpush.msra.mxu0 %v88
    %1033 = vmatmul.f32.gmra.mxu0 %v956
    %v1034 = vpop.f32.mrf.mxu0
    %v1035 = vadd.f32 0.0, %v1034
    %1036 = vdwg.mxu0
    %v1037 = vadd.f32 %v235, %v975
    %v1038 = vadd.f32 %v276, %v995
    %v1039 = vadd.f32 %v317, %v1015
    %v1040 = vadd.f32 %v358, %v1035
    %v1041 = vxor.u32 %v1037, 2147483648
    %v1042 = vmul.f32 %v1041, 1.442695
    %v1043 = vpow.pop %v1042
    %v1044 = vadd.f32 %v1043, 1.0
    %v1045 = vrcp.pop %v1044
    %v1046 = vmul.f32 %v1044, %v1045
    %v1047 = vsub.f32 1.0, %v1046
    %v1048 = vmul.f32 %v1045, %v1047
    %v1049 = vadd.f32 %v1045, %v1048
    %vm1050 = vweird.f32 %v1044
    %vm1051 = vweird.f32 %v1045
    %vm1052 = vmor %vm1050, %vm1051
    %v1053 = vsel %vm1052, %v1045, %v1049
    %v1054 = vand.u32 2147483647, %v1044
    %vm1055 = vcmp.eq.f32.partialorder %v1054, 8.507059e+37
    %v1056 = vand.u32 %v1044, 2147483648
    %v1057 = vor.u32 1.1754944e-38, %v1056
    %v1058 = vsel %vm1055, %v1057, %v1053
    %v1059 = vmul.f32 1.0, %v1058
    %v1060 = vxor.u32 %v1038, 2147483648
    %v1061 = vmul.f32 %v1060, 1.442695
    %v1062 = vpow.pop %v1061
    %v1063 = vadd.f32 %v1062, 1.0
    %v1064 = vrcp.pop %v1063
    %v1065 = vmul.f32 %v1063, %v1064
    %v1066 = vsub.f32 1.0, %v1065
    %v1067 = vmul.f32 %v1064, %v1066
    %v1068 = vadd.f32 %v1064, %v1067
    %vm1069 = vweird.f32 %v1063
    %vm1070 = vweird.f32 %v1064
    %vm1071 = vmor %vm1069, %vm1070
    %v1072 = vsel %vm1071, %v1064, %v1068
    %v1073 = vand.u32 2147483647, %v1063
    %vm1074 = vcmp.eq.f32.partialorder %v1073, 8.507059e+37
    %v1075 = vand.u32 %v1063, 2147483648
    %v1076 = vor.u32 1.1754944e-38, %v1075
    %v1077 = vsel %vm1074, %v1076, %v1072
    %v1078 = vmul.f32 1.0, %v1077
    %v1079 = vtanh.pop %v1039
    %v1080 = vxor.u32 %v1040, 2147483648
    %v1081 = vmul.f32 %v1080, 1.442695
    %v1082 = vpow.pop %v1081
    %v1083 = vadd.f32 %v1082, 1.0
    %v1084 = vrcp.pop %v1083
    %v1085 = vmul.f32 %v1083, %v1084
    %v1086 = vsub.f32 1.0, %v1085
    %v1087 = vmul.f32 %v1084, %v1086
    %v1088 = vadd.f32 %v1084, %v1087
    %vm1089 = vweird.f32 %v1083
    %vm1090 = vweird.f32 %v1084
    %vm1091 = vmor %vm1089, %vm1090
    %v1092 = vsel %vm1091, %v1084, %v1088
    %v1093 = vand.u32 2147483647, %v1083
    %vm1094 = vcmp.eq.f32.partialorder %v1093, 8.507059e+37
    %v1095 = vand.u32 %v1083, 2147483648
    %v1096 = vor.u32 1.1754944e-38, %v1095
    %v1097 = vsel %vm1094, %v1096, %v1092
    %v1098 = vmul.f32 1.0, %v1097
    %v1099 = vmul.f32 %v1078, %v954
    %v1100 = vmul.f32 %v1059, %v1079
    %v1101 = vadd.f32 %v1099, %v1100
    %v1102 = vtanh.pop %v1101
    %v1103 = vmul.f32 %v1098, %v1102
    %1104 = vmatpush.msra.mxu0 %v145
    %1105 = vmatpush.msra.mxu0 %v141
    %1106 = vmatpush.msra.mxu0 %v137
    %1107 = vmatpush.msra.mxu0 %v133
    %1108 = vmatpush.msra.mxu0 %v129
    %1109 = vmatpush.msra.mxu0 %v125
    %1110 = vmatpush.msra.mxu0 %v121
    %1111 = vmatpush.msra.mxu0 %v117
    %1112 = vmatpush.msra.mxu0 %v113
    %1113 = vmatpush.msra.mxu0 %v109
    %1114 = vmatpush.msra.mxu0 %v105
    %1115 = vmatpush.msra.mxu0 %v101
    %1116 = vmatpush.msra.mxu0 %v97
    %1117 = vmatpush.msra.mxu0 %v93
    %1118 = vmatpush.msra.mxu0 %v89
    %1119 = vmatpush.msra.mxu0 %v85
    %1120 = vmatmul.f32.gmra.mxu0 %v1103
    %v1121 = vpop.f32.mrf.mxu0
    %v1122 = vadd.f32 0.0, %v1121
    %1123 = vdwg.mxu0
    %1124 = vmatpush.msra.mxu0 %v146
    %1125 = vmatpush.msra.mxu0 %v142
    %1126 = vmatpush.msra.mxu0 %v138
    %1127 = vmatpush.msra.mxu0 %v134
    %1128 = vmatpush.msra.mxu0 %v130
    %1129 = vmatpush.msra.mxu0 %v126
    %1130 = vmatpush.msra.mxu0 %v122
    %1131 = vmatpush.msra.mxu0 %v118
    %1132 = vmatpush.msra.mxu0 %v114
    %1133 = vmatpush.msra.mxu0 %v110
    %1134 = vmatpush.msra.mxu0 %v106
    %1135 = vmatpush.msra.mxu0 %v102
    %1136 = vmatpush.msra.mxu0 %v98
    %1137 = vmatpush.msra.mxu0 %v94
    %1138 = vmatpush.msra.mxu0 %v90
    %1139 = vmatpush.msra.mxu0 %v86
    %1140 = vmatmul.f32.gmra.mxu0 %v1103
    %v1141 = vpop.f32.mrf.mxu0
    %v1142 = vadd.f32 0.0, %v1141
    %1143 = vdwg.mxu0
    %1144 = vmatpush.msra.mxu0 %v147
    %1145 = vmatpush.msra.mxu0 %v143
    %1146 = vmatpush.msra.mxu0 %v139
    %1147 = vmatpush.msra.mxu0 %v135
    %1148 = vmatpush.msra.mxu0 %v131
    %1149 = vmatpush.msra.mxu0 %v127
    %1150 = vmatpush.msra.mxu0 %v123
    %1151 = vmatpush.msra.mxu0 %v119
    %1152 = vmatpush.msra.mxu0 %v115
    %1153 = vmatpush.msra.mxu0 %v111
    %1154 = vmatpush.msra.mxu0 %v107
    %1155 = vmatpush.msra.mxu0 %v103
    %1156 = vmatpush.msra.mxu0 %v99
    %1157 = vmatpush.msra.mxu0 %v95
    %1158 = vmatpush.msra.mxu0 %v91
    %1159 = vmatpush.msra.mxu0 %v87
    %1160 = vmatmul.f32.gmra.mxu0 %v1103
    %v1161 = vpop.f32.mrf.mxu0
    %v1162 = vadd.f32 0.0, %v1161
    %1163 = vdwg.mxu0
    %1164 = vmatpush.msra.mxu0 %v148
    %1165 = vmatpush.msra.mxu0 %v144
    %1166 = vmatpush.msra.mxu0 %v140
    %1167 = vmatpush.msra.mxu0 %v136
    %1168 = vmatpush.msra.mxu0 %v132
    %1169 = vmatpush.msra.mxu0 %v128
    %1170 = vmatpush.msra.mxu0 %v124
    %1171 = vmatpush.msra.mxu0 %v120
    %1172 = vmatpush.msra.mxu0 %v116
    %1173 = vmatpush.msra.mxu0 %v112
    %1174 = vmatpush.msra.mxu0 %v108
    %1175 = vmatpush.msra.mxu0 %v104
    %1176 = vmatpush.msra.mxu0 %v100
    %1177 = vmatpush.msra.mxu0 %v96
    %1178 = vmatpush.msra.mxu0 %v92
    %1179 = vmatpush.msra.mxu0 %v88
    %1180 = vmatmul.f32.gmra.mxu0 %v1103
    %v1181 = vpop.f32.mrf.mxu0
    %v1182 = vadd.f32 0.0, %v1181
    %1183 = vdwg.mxu0
    %v1184 = vadd.f32 %v238, %v1122
    %v1185 = vadd.f32 %v279, %v1142
    %v1186 = vadd.f32 %v320, %v1162
    %v1187 = vadd.f32 %v361, %v1182
    %v1188 = vxor.u32 %v1184, 2147483648
    %v1189 = vmul.f32 %v1188, 1.442695
    %v1190 = vpow.pop %v1189
    %v1191 = vadd.f32 %v1190, 1.0
    %v1192 = vrcp.pop %v1191
    %v1193 = vmul.f32 %v1191, %v1192
    %v1194 = vsub.f32 1.0, %v1193
    %v1195 = vmul.f32 %v1192, %v1194
    %v1196 = vadd.f32 %v1192, %v1195
    %vm1197 = vweird.f32 %v1191
    %vm1198 = vweird.f32 %v1192
    %vm1199 = vmor %vm1197, %vm1198
    %v1200 = vsel %vm1199, %v1192, %v1196
    %v1201 = vand.u32 2147483647, %v1191
    %vm1202 = vcmp.eq.f32.partialorder %v1201, 8.507059e+37
    %v1203 = vand.u32 %v1191, 2147483648
    %v1204 = vor.u32 1.1754944e-38, %v1203
    %v1205 = vsel %vm1202, %v1204, %v1200
    %v1206 = vmul.f32 1.0, %v1205
    %v1207 = vxor.u32 %v1185, 2147483648
    %v1208 = vmul.f32 %v1207, 1.442695
    %v1209 = vpow.pop %v1208
    %v1210 = vadd.f32 %v1209, 1.0
    %v1211 = vrcp.pop %v1210
    %v1212 = vmul.f32 %v1210, %v1211
    %v1213 = vsub.f32 1.0, %v1212
    %v1214 = vmul.f32 %v1211, %v1213
    %v1215 = vadd.f32 %v1211, %v1214
    %vm1216 = vweird.f32 %v1210
    %vm1217 = vweird.f32 %v1211
    %vm1218 = vmor %vm1216, %vm1217
    %v1219 = vsel %vm1218, %v1211, %v1215
    %v1220 = vand.u32 2147483647, %v1210
    %vm1221 = vcmp.eq.f32.partialorder %v1220, 8.507059e+37
    %v1222 = vand.u32 %v1210, 2147483648
    %v1223 = vor.u32 1.1754944e-38, %v1222
    %v1224 = vsel %vm1221, %v1223, %v1219
    %v1225 = vmul.f32 1.0, %v1224
    %v1226 = vtanh.pop %v1186
    %v1227 = vxor.u32 %v1187, 2147483648
    %v1228 = vmul.f32 %v1227, 1.442695
    %v1229 = vpow.pop %v1228
    %v1230 = vadd.f32 %v1229, 1.0
    %v1231 = vrcp.pop %v1230
    %v1232 = vmul.f32 %v1230, %v1231
    %v1233 = vsub.f32 1.0, %v1232
    %v1234 = vmul.f32 %v1231, %v1233
    %v1235 = vadd.f32 %v1231, %v1234
    %vm1236 = vweird.f32 %v1230
    %vm1237 = vweird.f32 %v1231
    %vm1238 = vmor %vm1236, %vm1237
    %v1239 = vsel %vm1238, %v1231, %v1235
    %v1240 = vand.u32 2147483647, %v1230
    %vm1241 = vcmp.eq.f32.partialorder %v1240, 8.507059e+37
    %v1242 = vand.u32 %v1230, 2147483648
    %v1243 = vor.u32 1.1754944e-38, %v1242
    %v1244 = vsel %vm1241, %v1243, %v1239
    %v1245 = vmul.f32 1.0, %v1244
    %v1246 = vmul.f32 %v1225, %v1101
    %v1247 = vmul.f32 %v1206, %v1226
    %v1248 = vadd.f32 %v1246, %v1247
    %v1249 = vtanh.pop %v1248
    %v1250 = vmul.f32 %v1245, %v1249
    %1251 = vmatpush.msra.mxu0 %v145
    %1252 = vmatpush.msra.mxu0 %v141
    %1253 = vmatpush.msra.mxu0 %v137
    %1254 = vmatpush.msra.mxu0 %v133
    %1255 = vmatpush.msra.mxu0 %v129
    %1256 = vmatpush.msra.mxu0 %v125
    %1257 = vmatpush.msra.mxu0 %v121
    %1258 = vmatpush.msra.mxu0 %v117
    %1259 = vmatpush.msra.mxu0 %v113
    %1260 = vmatpush.msra.mxu0 %v109
    %1261 = vmatpush.msra.mxu0 %v105
    %1262 = vmatpush.msra.mxu0 %v101
    %1263 = vmatpush.msra.mxu0 %v97
    %1264 = vmatpush.msra.mxu0 %v93
    %1265 = vmatpush.msra.mxu0 %v89
    %1266 = vmatpush.msra.mxu0 %v85
    %1267 = vmatmul.f32.gmra.mxu0 %v1250
    %v1268 = vpop.f32.mrf.mxu0
    %v1269 = vadd.f32 0.0, %v1268
    %1270 = vdwg.mxu0
    %1271 = vmatpush.msra.mxu0 %v146
    %1272 = vmatpush.msra.mxu0 %v142
    %1273 = vmatpush.msra.mxu0 %v138
    %1274 = vmatpush.msra.mxu0 %v134
    %1275 = vmatpush.msra.mxu0 %v130
    %1276 = vmatpush.msra.mxu0 %v126
    %1277 = vmatpush.msra.mxu0 %v122
    %1278 = vmatpush.msra.mxu0 %v118
    %1279 = vmatpush.msra.mxu0 %v114
    %1280 = vmatpush.msra.mxu0 %v110
    %1281 = vmatpush.msra.mxu0 %v106
    %1282 = vmatpush.msra.mxu0 %v102
    %1283 = vmatpush.msra.mxu0 %v98
    %1284 = vmatpush.msra.mxu0 %v94
    %1285 = vmatpush.msra.mxu0 %v90
    %1286 = vmatpush.msra.mxu0 %v86
    %1287 = vmatmul.f32.gmra.mxu0 %v1250
    %v1288 = vpop.f32.mrf.mxu0
    %v1289 = vadd.f32 0.0, %v1288
    %1290 = vdwg.mxu0
    %1291 = vmatpush.msra.mxu0 %v147
    %1292 = vmatpush.msra.mxu0 %v143
    %1293 = vmatpush.msra.mxu0 %v139
    %1294 = vmatpush.msra.mxu0 %v135
    %1295 = vmatpush.msra.mxu0 %v131
    %1296 = vmatpush.msra.mxu0 %v127
    %1297 = vmatpush.msra.mxu0 %v123
    %1298 = vmatpush.msra.mxu0 %v119
    %1299 = vmatpush.msra.mxu0 %v115
    %1300 = vmatpush.msra.mxu0 %v111
    %1301 = vmatpush.msra.mxu0 %v107
    %1302 = vmatpush.msra.mxu0 %v103
    %1303 = vmatpush.msra.mxu0 %v99
    %1304 = vmatpush.msra.mxu0 %v95
    %1305 = vmatpush.msra.mxu0 %v91
    %1306 = vmatpush.msra.mxu0 %v87
    %1307 = vmatmul.f32.gmra.mxu0 %v1250
    %v1308 = vpop.f32.mrf.mxu0
    %v1309 = vadd.f32 0.0, %v1308
    %1310 = vdwg.mxu0
    %1311 = vmatpush.msra.mxu0 %v148
    %1312 = vmatpush.msra.mxu0 %v144
    %1313 = vmatpush.msra.mxu0 %v140
    %1314 = vmatpush.msra.mxu0 %v136
    %1315 = vmatpush.msra.mxu0 %v132
    %1316 = vmatpush.msra.mxu0 %v128
    %1317 = vmatpush.msra.mxu0 %v124
    %1318 = vmatpush.msra.mxu0 %v120
    %1319 = vmatpush.msra.mxu0 %v116
    %1320 = vmatpush.msra.mxu0 %v112
    %1321 = vmatpush.msra.mxu0 %v108
    %1322 = vmatpush.msra.mxu0 %v104
    %1323 = vmatpush.msra.mxu0 %v100
    %1324 = vmatpush.msra.mxu0 %v96
    %1325 = vmatpush.msra.mxu0 %v92
    %1326 = vmatpush.msra.mxu0 %v88
    %1327 = vmatmul.f32.gmra.mxu0 %v1250
    %v1328 = vpop.f32.mrf.mxu0
    %v1329 = vadd.f32 0.0, %v1328
    %1330 = vdwg.mxu0
    %v1331 = vadd.f32 %v241, %v1269
    %v1332 = vadd.f32 %v282, %v1289
    %v1333 = vadd.f32 %v323, %v1309
    %v1334 = vadd.f32 %v364, %v1329
    %v1335 = vxor.u32 %v1331, 2147483648
    %v1336 = vmul.f32 %v1335, 1.442695
    %v1337 = vpow.pop %v1336
    %v1338 = vadd.f32 %v1337, 1.0
    %v1339 = vrcp.pop %v1338
    %v1340 = vmul.f32 %v1338, %v1339
    %v1341 = vsub.f32 1.0, %v1340
    %v1342 = vmul.f32 %v1339, %v1341
    %v1343 = vadd.f32 %v1339, %v1342
    %vm1344 = vweird.f32 %v1338
    %vm1345 = vweird.f32 %v1339
    %vm1346 = vmor %vm1344, %vm1345
    %v1347 = vsel %vm1346, %v1339, %v1343
    %v1348 = vand.u32 2147483647, %v1338
    %vm1349 = vcmp.eq.f32.partialorder %v1348, 8.507059e+37
    %v1350 = vand.u32 %v1338, 2147483648
    %v1351 = vor.u32 1.1754944e-38, %v1350
    %v1352 = vsel %vm1349, %v1351, %v1347
    %v1353 = vmul.f32 1.0, %v1352
    %v1354 = vxor.u32 %v1332, 2147483648
    %v1355 = vmul.f32 %v1354, 1.442695
    %v1356 = vpow.pop %v1355
    %v1357 = vadd.f32 %v1356, 1.0
    %v1358 = vrcp.pop %v1357
    %v1359 = vmul.f32 %v1357, %v1358
    %v1360 = vsub.f32 1.0, %v1359
    %v1361 = vmul.f32 %v1358, %v1360
    %v1362 = vadd.f32 %v1358, %v1361
    %vm1363 = vweird.f32 %v1357
    %vm1364 = vweird.f32 %v1358
    %vm1365 = vmor %vm1363, %vm1364
    %v1366 = vsel %vm1365, %v1358, %v1362
    %v1367 = vand.u32 2147483647, %v1357
    %vm1368 = vcmp.eq.f32.partialorder %v1367, 8.507059e+37
    %v1369 = vand.u32 %v1357, 2147483648
    %v1370 = vor.u32 1.1754944e-38, %v1369
    %v1371 = vsel %vm1368, %v1370, %v1366
    %v1372 = vmul.f32 1.0, %v1371
    %v1373 = vtanh.pop %v1333
    %v1374 = vxor.u32 %v1334, 2147483648
    %v1375 = vmul.f32 %v1374, 1.442695
    %v1376 = vpow.pop %v1375
    %v1377 = vadd.f32 %v1376, 1.0
    %v1378 = vrcp.pop %v1377
    %v1379 = vmul.f32 %v1377, %v1378
    %v1380 = vsub.f32 1.0, %v1379
    %v1381 = vmul.f32 %v1378, %v1380
    %v1382 = vadd.f32 %v1378, %v1381
    %vm1383 = vweird.f32 %v1377
    %vm1384 = vweird.f32 %v1378
    %vm1385 = vmor %vm1383, %vm1384
    %v1386 = vsel %vm1385, %v1378, %v1382
    %v1387 = vand.u32 2147483647, %v1377
    %vm1388 = vcmp.eq.f32.partialorder %v1387, 8.507059e+37
    %v1389 = vand.u32 %v1377, 2147483648
    %v1390 = vor.u32 1.1754944e-38, %v1389
    %v1391 = vsel %vm1388, %v1390, %v1386
    %v1392 = vmul.f32 1.0, %v1391
    %v1393 = vmul.f32 %v1372, %v1248
    %v1394 = vmul.f32 %v1353, %v1373
    %v1395 = vadd.f32 %v1393, %v1394
    %v1396 = vtanh.pop %v1395
    %v1397 = vmul.f32 %v1392, %v1396
    %1398 = vmatpush.msra.mxu0 %v145
    %1399 = vmatpush.msra.mxu0 %v141
    %1400 = vmatpush.msra.mxu0 %v137
    %1401 = vmatpush.msra.mxu0 %v133
    %1402 = vmatpush.msra.mxu0 %v129
    %1403 = vmatpush.msra.mxu0 %v125
    %1404 = vmatpush.msra.mxu0 %v121
    %1405 = vmatpush.msra.mxu0 %v117
    %1406 = vmatpush.msra.mxu0 %v113
    %1407 = vmatpush.msra.mxu0 %v109
    %1408 = vmatpush.msra.mxu0 %v105
    %1409 = vmatpush.msra.mxu0 %v101
    %1410 = vmatpush.msra.mxu0 %v97
    %1411 = vmatpush.msra.mxu0 %v93
    %1412 = vmatpush.msra.mxu0 %v89
    %1413 = vmatpush.msra.mxu0 %v85
    %1414 = vmatmul.f32.gmra.mxu0 %v1397
    %v1415 = vpop.f32.mrf.mxu0
    %v1416 = vadd.f32 0.0, %v1415
    %1417 = vdwg.mxu0
    %1418 = vmatpush.msra.mxu0 %v146
    %1419 = vmatpush.msra.mxu0 %v142
    %1420 = vmatpush.msra.mxu0 %v138
    %1421 = vmatpush.msra.mxu0 %v134
    %1422 = vmatpush.msra.mxu0 %v130
    %1423 = vmatpush.msra.mxu0 %v126
    %1424 = vmatpush.msra.mxu0 %v122
    %1425 = vmatpush.msra.mxu0 %v118
    %1426 = vmatpush.msra.mxu0 %v114
    %1427 = vmatpush.msra.mxu0 %v110
    %1428 = vmatpush.msra.mxu0 %v106
    %1429 = vmatpush.msra.mxu0 %v102
    %1430 = vmatpush.msra.mxu0 %v98
    %1431 = vmatpush.msra.mxu0 %v94
    %1432 = vmatpush.msra.mxu0 %v90
    %1433 = vmatpush.msra.mxu0 %v86
    %1434 = vmatmul.f32.gmra.mxu0 %v1397
    %v1435 = vpop.f32.mrf.mxu0
    %v1436 = vadd.f32 0.0, %v1435
    %1437 = vdwg.mxu0
    %1438 = vmatpush.msra.mxu0 %v147
    %1439 = vmatpush.msra.mxu0 %v143
    %1440 = vmatpush.msra.mxu0 %v139
    %1441 = vmatpush.msra.mxu0 %v135
    %1442 = vmatpush.msra.mxu0 %v131
    %1443 = vmatpush.msra.mxu0 %v127
    %1444 = vmatpush.msra.mxu0 %v123
    %1445 = vmatpush.msra.mxu0 %v119
    %1446 = vmatpush.msra.mxu0 %v115
    %1447 = vmatpush.msra.mxu0 %v111
    %1448 = vmatpush.msra.mxu0 %v107
    %1449 = vmatpush.msra.mxu0 %v103
    %1450 = vmatpush.msra.mxu0 %v99
    %1451 = vmatpush.msra.mxu0 %v95
    %1452 = vmatpush.msra.mxu0 %v91
    %1453 = vmatpush.msra.mxu0 %v87
    %1454 = vmatmul.f32.gmra.mxu0 %v1397
    %v1455 = vpop.f32.mrf.mxu0
    %v1456 = vadd.f32 0.0, %v1455
    %1457 = vdwg.mxu0
    %1458 = vmatpush.msra.mxu0 %v148
    %1459 = vmatpush.msra.mxu0 %v144
    %1460 = vmatpush.msra.mxu0 %v140
    %1461 = vmatpush.msra.mxu0 %v136
    %1462 = vmatpush.msra.mxu0 %v132
    %1463 = vmatpush.msra.mxu0 %v128
    %1464 = vmatpush.msra.mxu0 %v124
    %1465 = vmatpush.msra.mxu0 %v120
    %1466 = vmatpush.msra.mxu0 %v116
    %1467 = vmatpush.msra.mxu0 %v112
    %1468 = vmatpush.msra.mxu0 %v108
    %1469 = vmatpush.msra.mxu0 %v104
    %1470 = vmatpush.msra.mxu0 %v100
    %1471 = vmatpush.msra.mxu0 %v96
    %1472 = vmatpush.msra.mxu0 %v92
    %1473 = vmatpush.msra.mxu0 %v88
    %1474 = vmatmul.f32.gmra.mxu0 %v1397
    %v1475 = vpop.f32.mrf.mxu0
    %v1476 = vadd.f32 0.0, %v1475
    %1477 = vdwg.mxu0
    %v1478 = vadd.f32 %v244, %v1416
    %v1479 = vadd.f32 %v285, %v1436
    %v1480 = vadd.f32 %v326, %v1456
    %v1481 = vadd.f32 %v367, %v1476
    %v1482 = vxor.u32 %v1478, 2147483648
    %v1483 = vmul.f32 %v1482, 1.442695
    %v1484 = vpow.pop %v1483
    %v1485 = vadd.f32 %v1484, 1.0
    %v1486 = vrcp.pop %v1485
    %v1487 = vmul.f32 %v1485, %v1486
    %v1488 = vsub.f32 1.0, %v1487
    %v1489 = vmul.f32 %v1486, %v1488
    %v1490 = vadd.f32 %v1486, %v1489
    %vm1491 = vweird.f32 %v1485
    %vm1492 = vweird.f32 %v1486
    %vm1493 = vmor %vm1491, %vm1492
    %v1494 = vsel %vm1493, %v1486, %v1490
    %v1495 = vand.u32 2147483647, %v1485
    %vm1496 = vcmp.eq.f32.partialorder %v1495, 8.507059e+37
    %v1497 = vand.u32 %v1485, 2147483648
    %v1498 = vor.u32 1.1754944e-38, %v1497
    %v1499 = vsel %vm1496, %v1498, %v1494
    %v1500 = vmul.f32 1.0, %v1499
    %v1501 = vxor.u32 %v1479, 2147483648
    %v1502 = vmul.f32 %v1501, 1.442695
    %v1503 = vpow.pop %v1502
    %v1504 = vadd.f32 %v1503, 1.0
    %v1505 = vrcp.pop %v1504
    %v1506 = vmul.f32 %v1504, %v1505
    %v1507 = vsub.f32 1.0, %v1506
    %v1508 = vmul.f32 %v1505, %v1507
    %v1509 = vadd.f32 %v1505, %v1508
    %vm1510 = vweird.f32 %v1504
    %vm1511 = vweird.f32 %v1505
    %vm1512 = vmor %vm1510, %vm1511
    %v1513 = vsel %vm1512, %v1505, %v1509
    %v1514 = vand.u32 2147483647, %v1504
    %vm1515 = vcmp.eq.f32.partialorder %v1514, 8.507059e+37
    %v1516 = vand.u32 %v1504, 2147483648
    %v1517 = vor.u32 1.1754944e-38, %v1516
    %v1518 = vsel %vm1515, %v1517, %v1513
    %v1519 = vmul.f32 1.0, %v1518
    %v1520 = vtanh.pop %v1480
    %v1521 = vxor.u32 %v1481, 2147483648
    %v1522 = vmul.f32 %v1521, 1.442695
    %v1523 = vpow.pop %v1522
    %v1524 = vadd.f32 %v1523, 1.0
    %v1525 = vrcp.pop %v1524
    %v1526 = vmul.f32 %v1524, %v1525
    %v1527 = vsub.f32 1.0, %v1526
    %v1528 = vmul.f32 %v1525, %v1527
    %v1529 = vadd.f32 %v1525, %v1528
    %vm1530 = vweird.f32 %v1524
    %vm1531 = vweird.f32 %v1525
    %vm1532 = vmor %vm1530, %vm1531
    %v1533 = vsel %vm1532, %v1525, %v1529
    %v1534 = vand.u32 2147483647, %v1524
    %vm1535 = vcmp.eq.f32.partialorder %v1534, 8.507059e+37
    %v1536 = vand.u32 %v1524, 2147483648
    %v1537 = vor.u32 1.1754944e-38, %v1536
    %v1538 = vsel %vm1535, %v1537, %v1533
    %v1539 = vmul.f32 1.0, %v1538
    %v1540 = vmul.f32 %v1519, %v1395
    %v1541 = vmul.f32 %v1500, %v1520
    %v1542 = vadd.f32 %v1540, %v1541
    %v1543 = vtanh.pop %v1542
    %v1544 = vmul.f32 %v1539, %v1543
    %v1545 = vld [vmem:[#allocation5] sm:$0xff]
    %v1546 = vld [vmem:[#allocation5 + $0x8] sm:$0xff]
    %v1547 = vld [vmem:[#allocation5 + $0x10] sm:$0xff]
    %v1548 = vld [vmem:[#allocation5 + $0x18] sm:$0xff]
    %v1549 = vld [vmem:[#allocation5 + $0x20] sm:$0xff]
    %v1550 = vld [vmem:[#allocation5 + $0x28] sm:$0xff]
    %v1551 = vld [vmem:[#allocation5 + $0x30] sm:$0xff]
    %v1552 = vld [vmem:[#allocation5 + $0x38] sm:$0xff]
    %v1553 = vld [vmem:[#allocation5 + $0x40] sm:$0xff]
    %v1554 = vld [vmem:[#allocation5 + $0x48] sm:$0xff]
    %v1555 = vld [vmem:[#allocation5 + $0x50] sm:$0xff]
    %v1556 = vld [vmem:[#allocation5 + $0x58] sm:$0xff]
    %v1557 = vld [vmem:[#allocation5 + $0x60] sm:$0xff]
    %v1558 = vld [vmem:[#allocation5 + $0x68] sm:$0xff]
    %v1559 = vld [vmem:[#allocation5 + $0x70] sm:$0xff]
    %v1560 = vld [vmem:[#allocation5 + $0x78] sm:$0xff]
    %v1561 = vld [vmem:[%s5] sm:$0x1]
    %v1563 = vperm.slane %v1561, 0
    %1565 = vmatpush.msra.mxu0 %v1560
    %1566 = vmatpush.msra.mxu0 %v1559
    %1567 = vmatpush.msra.mxu0 %v1558
    %1568 = vmatpush.msra.mxu0 %v1557
    %1569 = vmatpush.msra.mxu0 %v1556
    %1570 = vmatpush.msra.mxu0 %v1555
    %1571 = vmatpush.msra.mxu0 %v1554
    %1572 = vmatpush.msra.mxu0 %v1553
    %1573 = vmatpush.msra.mxu0 %v1552
    %1574 = vmatpush.msra.mxu0 %v1551
    %1575 = vmatpush.msra.mxu0 %v1550
    %1576 = vmatpush.msra.mxu0 %v1549
    %1577 = vmatpush.msra.mxu0 %v1548
    %1578 = vmatpush.msra.mxu0 %v1547
    %1579 = vmatpush.msra.mxu0 %v1546
    %1580 = vmatpush.msra.mxu0 %v1545
    %1581 = vmatmul.f32.gmra.mxu0 %v1544
    %v1582 = vpop.f32.mrf.mxu0
    %v1583 = vadd.f32 %v1563, %v1582
    %1584 = vdwg.mxu0
    %v1585 = vmax.f32 %v1583, 0.0
    %v1586 = vld [vmem:[#allocation7] sm:$0xff]
    %v1587 = vld [vmem:[#allocation7 + $0x8] sm:$0xff]
    %v1588 = vld [vmem:[#allocation7 + $0x10] sm:$0xff]
    %v1589 = vld [vmem:[#allocation7 + $0x18] sm:$0xff]
    %v1590 = vld [vmem:[#allocation7 + $0x20] sm:$0xff]
    %v1591 = vld [vmem:[#allocation7 + $0x28] sm:$0xff]
    %v1592 = vld [vmem:[#allocation7 + $0x30] sm:$0xff]
    %v1593 = vld [vmem:[#allocation7 + $0x38] sm:$0xff]
    %v1594 = vld [vmem:[#allocation7 + $0x40] sm:$0xff]
    %v1595 = vld [vmem:[#allocation7 + $0x48] sm:$0xff]
    %v1596 = vld [vmem:[#allocation7 + $0x50] sm:$0xff]
    %v1597 = vld [vmem:[#allocation7 + $0x58] sm:$0xff]
    %v1598 = vld [vmem:[#allocation7 + $0x60] sm:$0xff]
    %v1599 = vld [vmem:[#allocation7 + $0x68] sm:$0xff]
    %v1600 = vld [vmem:[#allocation7 + $0x70] sm:$0xff]
    %v1601 = vld [vmem:[#allocation7 + $0x78] sm:$0xff]
    %v1602 = vld [vmem:[%s7] sm:$0x1]
    %v1604 = vperm.slane %v1602, 0
    %1606 = vmatpush.msra.mxu0 %v1601
    %1607 = vmatpush.msra.mxu0 %v1600
    %1608 = vmatpush.msra.mxu0 %v1599
    %1609 = vmatpush.msra.mxu0 %v1598
    %1610 = vmatpush.msra.mxu0 %v1597
    %1611 = vmatpush.msra.mxu0 %v1596
    %1612 = vmatpush.msra.mxu0 %v1595
    %1613 = vmatpush.msra.mxu0 %v1594
    %1614 = vmatpush.msra.mxu0 %v1593
    %1615 = vmatpush.msra.mxu0 %v1592
    %1616 = vmatpush.msra.mxu0 %v1591
    %1617 = vmatpush.msra.mxu0 %v1590
    %1618 = vmatpush.msra.mxu0 %v1589
    %1619 = vmatpush.msra.mxu0 %v1588
    %1620 = vmatpush.msra.mxu0 %v1587
    %1621 = vmatpush.msra.mxu0 %v1586
    %1622 = vmatmul.f32.gmra.mxu0 %v1585
    %v1623 = vpop.f32.mrf.mxu0
    %v1624 = vadd.f32 %v1604, %v1623
    %1625 = vdwg.mxu0
    %1626 = vst [vmem:[#allocation8] sm:$0xff] %v1624
    // Predicated region
    $region46: #{tpu_custom_call.1} parent=1 // pred_check
      _
    $region47: #{tpu_custom_call.1} parent=1 // pred_check_branch
      %1628 = sbr.rel (0) target = $region49
    $region48: #{tpu_custom_call.1} parent=1 // pred_region
      %1630 = vsyncadd [#allocation4], 0
      %s1632 = sshll.u32 [#allocation8], 4
      %s1633 = int_to_ptr.vmem [resolvable:$true] %s1632
      %s1634 = sshll.u32 %s8, 4
      %s1635 = int_to_ptr.hbm [resolvable:$true] %s1634
      %1637 = dma.vmem_to_hbm [thread:$0]  %s1633, 128, %s1635, [#allocation4]
    $region49: #{tpu_custom_call.1} parent=1 // pred_fallthru
      _
    // Predicated region
    $region50: #{tpu_custom_call.1} parent=1 // pred_check
      _
    $region51: #{tpu_custom_call.1} parent=1 // pred_check_branch
      %1639 = sbr.rel (0) target = $region53
    $region52: #{tpu_custom_call.1} parent=1 // pred_region
      %1641 = dma.done [#allocation4], 128
    $region53: #{tpu_custom_call.1} parent=1 // pred_fallthru
      _
    %1642 = vsyncpa [#allocation3], 1
    %1643 = vsyncpa [#allocation6], 1
    %1644 = vsyncpa [#allocation4], 1

</llo_original>
